<compile_context>
chip_gen: v7x
topology: tpu7x:2x2x1
jax: 0.10.0
libtpu: 0.0.40
codegen_flags: <defaults>
</compile_context>

<pallas_src>
import functools

import jax
import jax.numpy as jnp
from jax.experimental import pallas as pl
from jax.experimental.pallas import tpu as pltpu


# ----------------------------------------------------------------------------
# Pallas kernel: one batch tile of the whole VAE forward
#   encoder MLP -> fused (mu||logvar) head -> reparam -> decoder MLP -> fused head
# ----------------------------------------------------------------------------
def _vae_kernel(
    # inputs (batch tile)
    x_ref, eps_ref,
    # encoder params (resident)
    ew1_ref, eb1_ref, ew2_ref, eb2_ref, ewh_ref, ebh_ref,
    # decoder params (resident)
    dw1_ref, db1_ref, dw2_ref, db2_ref, dwh_ref, dbh_ref,
    # outputs (batch tile)
    enc_ref,   # (TB, 3L)  = mu || logvar || sample
    dec_ref,   # (TB, 2D)  = mu || logvar
    *, latent_dim,
):
    f32 = jnp.float32
    bf16 = jnp.bfloat16
    L = latent_dim

    # ---- encoder (ProbabilityNN): bf16 matmuls, f32 accumulate/elementwise ----
    x = x_ref[...].astype(bf16)
    h = jnp.dot(x, ew1_ref[...], preferred_element_type=f32) + eb1_ref[...]
    h = jnp.maximum(h, 0.0).astype(bf16)
    h = jnp.dot(h, ew2_ref[...], preferred_element_type=f32) + eb2_ref[...]
    h = jnp.maximum(h, 0.0).astype(bf16)
    zhead = jnp.dot(h, ewh_ref[...], preferred_element_type=f32) + ebh_ref[...]
    z_mu = zhead[:, :L]
    z_lv = zhead[:, L:]

    # ---- reparameterization: encoder_outputs.sample (f32) ----
    z = z_mu + jnp.exp(0.5 * z_lv) * eps_ref[...]

    # lane-aligned stores into one lane-dense encoder slab
    enc_ref[:, 0:L] = z_mu
    enc_ref[:, L:2 * L] = z_lv
    enc_ref[:, 2 * L:3 * L] = z

    # ---- decoder (ProbabilityNN) on the encoder sample ----
    d = z.astype(bf16)
    d = jnp.dot(d, dw1_ref[...], preferred_element_type=f32) + db1_ref[...]
    d = jnp.maximum(d, 0.0).astype(bf16)
    d = jnp.dot(d, dw2_ref[...], preferred_element_type=f32) + db2_ref[...]
    d = jnp.maximum(d, 0.0).astype(bf16)
    dec_ref[...] = jnp.dot(d, dwh_ref[...], preferred_element_type=f32) + dbh_ref[...]


# ----------------------------------------------------------------------------
# Wrapper
# ----------------------------------------------------------------------------
@jax.jit
def vae_forward(x, eps, params):
    """Returns ModelOutput-equivalent pytree:
       encoder: (mu, logvar, sample), decoder: (mu, logvar)."""
    B, D = x.shape
    L = eps.shape[1]
    H = params[0].shape[1]

    # batch tile: 128-row MXU granule when possible, else single block
    TB = 128 if (B % 128 == 0) else B
    grid = (B // TB,)

    in_specs = [
        pl.BlockSpec((TB, D), lambda i: (i, 0)),   # x
        pl.BlockSpec((TB, L), lambda i: (i, 0)),   # eps
    ] + [
        # weights / biases: constant block index -> stay VMEM-resident
        pl.BlockSpec(p.shape, lambda i: (0, 0)) for p in params
    ]

    out_shapes = (
        jax.ShapeDtypeStruct((B, 3 * L), jnp.float32),  # encoder slab: mu||logvar||sample
        jax.ShapeDtypeStruct((B, 2 * D), jnp.float32),  # decoder slab: mu||logvar
    )
    out_specs = (
        pl.BlockSpec((TB, 3 * L), lambda i: (i, 0)),
        pl.BlockSpec((TB, 2 * D), lambda i: (i, 0)),
    )

    flops = 2 * B * (D * H + H * H + H * 2 * L + L * H + H * H + H * 2 * D)
    bytes_accessed = (
        x.size * x.dtype.itemsize
        + eps.size * eps.dtype.itemsize
        + sum(p.size * p.dtype.itemsize for p in params)
        + B * 3 * L * 4
        + B * 2 * D * 4
    )

    enc, dec = pl.pallas_call(
        functools.partial(_vae_kernel, latent_dim=L),
        grid=grid,
        in_specs=in_specs,
        out_specs=out_specs,
        out_shape=out_shapes,
        compiler_params=pltpu.CompilerParams(
            dimension_semantics=("parallel",),
            vmem_limit_bytes=64 * 1024 * 1024,
        ),
        cost_estimate=pl.CostEstimate(
            flops=int(flops),
            transcendentals=int(B * L),
            bytes_accessed=int(bytes_accessed),
        ),
    )(x, eps, *params)

    return {
        "encoder": {
            "mu": enc[:, :L],
            "logvar": enc[:, L:2 * L],
            "sample": enc[:, 2 * L:],
        },
        "decoder": {
            "mu": dec[:, :D],
            "logvar": dec[:, D:],
        },
    }


# ----------------------------------------------------------------------------
# Deterministic parameter init (nn.Linear shapes, stored transposed;
# mu/logvar head weights pre-fused along the output dimension).
# ----------------------------------------------------------------------------
def init_params(key, d_in, d_hidden, d_latent):
    def lin(k, fan_in, fan_out):
        kw, kb = jax.random.split(k)
        w = (jax.random.normal(kw, (fan_in, fan_out), jnp.float32) * 0.05
             ).astype(jnp.bfloat16)
        b = jax.random.normal(kb, (1, fan_out), jnp.float32) * 0.01
        return w, b

    keys = jax.random.split(key, 6)
    # encoder: d_in -> H -> H -> (L || L)
    ew1, eb1 = lin(keys[0], d_in, d_hidden)
    ew2, eb2 = lin(keys[1], d_hidden, d_hidden)
    ewh, ebh = lin(keys[2], d_hidden, 2 * d_latent)   # fused mu||logvar head
    # decoder: L -> H -> H -> (d_in || d_in)
    dw1, db1 = lin(keys[3], d_latent, d_hidden)
    dw2, db2 = lin(keys[4], d_hidden, d_hidden)
    dwh, dbh = lin(keys[5], d_hidden, 2 * d_in)       # fused mu||logvar head

    return (ew1, eb1, ew2, eb2, ewh, ebh,
            dw1, db1, dw2, db2, dwh, dbh)


# Pure-JAX reference (same bf16-matmul / f32-accumulate path) for correctness.
def vae_reference(x, eps, p, d_latent):
    (ew1, eb1, ew2, eb2, ewh, ebh, dw1, db1, dw2, db2, dwh, dbh) = p
    bf16, f32 = jnp.bfloat16, jnp.float32

    def dot(a, w):
        return jnp.dot(a.astype(bf16), w, preferred_element_type=f32)

    h = jnp.maximum(dot(x, ew1) + eb1, 0.0)
    h = jnp.maximum(dot(h, ew2) + eb2, 0.0)
    zh = dot(h, ewh) + ebh
    z_mu, z_lv = zh[:, :d_latent], zh[:, d_latent:]
    z = z_mu + jnp.exp(0.5 * z_lv) * eps
    d = jnp.maximum(dot(z, dw1) + db1, 0.0)
    d = jnp.maximum(dot(d, dw2) + db2, 0.0)
    dh = dot(d, dwh) + dbh
    D = dh.shape[1] // 2
    return z_mu, z_lv, z, dh[:, :D], dh[:, D:]


if __name__ == "__main__":
    # MXU/lane-aligned sizes: batch (2 tiles of 128), feature dims mult. of 128
    B, D, H, L = 256, 256, 128, 128

    key = jax.random.PRNGKey(0)
    k_x, k_eps, k_p = jax.random.split(key, 3)

    x = jax.random.normal(k_x, (B, D), jnp.float32)
    eps = jax.random.normal(k_eps, (B, L), jnp.float32)
    params = init_params(k_p, D, H, L)

    out = vae_forward(x, eps, params)
    out = jax.block_until_ready(out)

    ref = vae_reference(x, eps, params, L)
    got = (out["encoder"]["mu"], out["encoder"]["logvar"], out["encoder"]["sample"],
           out["decoder"]["mu"], out["decoder"]["logvar"])
    for g, r in zip(got, ref):
        assert jnp.allclose(g, r, atol=5e-3, rtol=5e-3), "mismatch vs reference"

    print("KERNEL_OK")
</pallas_src>

<mosaic_0001>
module attributes {stable_mosaic.version = 11 : i64} {
  func.func @_vae_kernel(%arg0: i32, %arg1: memref<128x256xf32, #tpu.memory_space<vmem>>, %arg2: memref<128x128xf32, #tpu.memory_space<vmem>>, %arg3: memref<256x128xbf16, #tpu.memory_space<vmem>>, %arg4: memref<1x128xf32, #tpu.memory_space<vmem>>, %arg5: memref<128x128xbf16, #tpu.memory_space<vmem>>, %arg6: memref<1x128xf32, #tpu.memory_space<vmem>>, %arg7: memref<128x256xbf16, #tpu.memory_space<vmem>>, %arg8: memref<1x256xf32, #tpu.memory_space<vmem>>, %arg9: memref<128x128xbf16, #tpu.memory_space<vmem>>, %arg10: memref<1x128xf32, #tpu.memory_space<vmem>>, %arg11: memref<128x128xbf16, #tpu.memory_space<vmem>>, %arg12: memref<1x128xf32, #tpu.memory_space<vmem>>, %arg13: memref<128x512xbf16, #tpu.memory_space<vmem>>, %arg14: memref<1x512xf32, #tpu.memory_space<vmem>>, %arg15: memref<128x384xf32, #tpu.memory_space<vmem>>, %arg16: memref<128x512xf32, #tpu.memory_space<vmem>>) attributes {dimension_semantics = [#tpu.dimension_semantics<parallel>], iteration_bounds = array<i64: 2>, scalar_prefetch = 0 : i64, scratch_operands = 0 : i64, tpu.core_type = #tpu.core_type<tc>, window_params = [{transform_indices = @transform_0, window_bounds = array<i64: 128, 256>}, {transform_indices = @transform_1, window_bounds = array<i64: 128, 128>}, {pipeline_mode = #tpu.pipeline_mode<synchronous>, transform_indices = @transform_2, window_bounds = array<i64: 256, 128>}, {pipeline_mode = #tpu.pipeline_mode<synchronous>, transform_indices = @transform_3, window_bounds = array<i64: 1, 128>}, {pipeline_mode = #tpu.pipeline_mode<synchronous>, transform_indices = @transform_4, window_bounds = array<i64: 128, 128>}, {pipeline_mode = #tpu.pipeline_mode<synchronous>, transform_indices = @transform_5, window_bounds = array<i64: 1, 128>}, {pipeline_mode = #tpu.pipeline_mode<synchronous>, transform_indices = @transform_6, window_bounds = array<i64: 128, 256>}, {pipeline_mode = #tpu.pipeline_mode<synchronous>, transform_indices = @transform_7, window_bounds = array<i64: 1, 256>}, {pipeline_mode = #tpu.pipeline_mode<synchronous>, transform_indices = @transform_8, window_bounds = array<i64: 128, 128>}, {pipeline_mode = #tpu.pipeline_mode<synchronous>, transform_indices = @transform_9, window_bounds = array<i64: 1, 128>}, {pipeline_mode = #tpu.pipeline_mode<synchronous>, transform_indices = @transform_10, window_bounds = array<i64: 128, 128>}, {pipeline_mode = #tpu.pipeline_mode<synchronous>, transform_indices = @transform_11, window_bounds = array<i64: 1, 128>}, {pipeline_mode = #tpu.pipeline_mode<synchronous>, transform_indices = @transform_12, window_bounds = array<i64: 128, 512>}, {pipeline_mode = #tpu.pipeline_mode<synchronous>, transform_indices = @transform_13, window_bounds = array<i64: 1, 512>}, {transform_indices = @transform_14, window_bounds = array<i64: 128, 384>}, {transform_indices = @transform_15, window_bounds = array<i64: 128, 512>}]} {
    %c0 = arith.constant 0 : index
    %c0_0 = arith.constant 0 : index
    %0 = vector.load %arg1[%c0, %c0_0] : memref<128x256xf32, #tpu.memory_space<vmem>>, vector<128x256xf32>
    %1 = arith.truncf %0 : vector<128x256xf32> to vector<128x256xbf16>
    %c0_1 = arith.constant 0 : index
    %c0_2 = arith.constant 0 : index
    %2 = vector.load %arg3[%c0_1, %c0_2] : memref<256x128xbf16, #tpu.memory_space<vmem>>, vector<256x128xbf16>
    %cst = arith.constant dense<0.000000e+00> : vector<128x128xf32>
    %3 = tpu.matmul %1, %2, %cst {dimension_numbers = #tpu.dot_dimension_numbers<[1], [0], [0], [1], [0, 0, 1, 1], [], []>} : vector<128x256xbf16>, vector<256x128xbf16>, vector<128x128xf32> -> vector<128x128xf32>
    %c0_3 = arith.constant 0 : index
    %c0_4 = arith.constant 0 : index
    %4 = vector.load %arg4[%c0_3, %c0_4] : memref<1x128xf32, #tpu.memory_space<vmem>>, vector<1x128xf32>
    %5 = vector.broadcast %4 : vector<1x128xf32> to vector<128x128xf32>
    %6 = arith.addf %3, %5 : vector<128x128xf32>
    %cst_5 = arith.constant 0.000000e+00 : f32
    %7 = vector.broadcast %cst_5 : f32 to vector<128x128xf32>
    %8 = arith.maximumf %6, %7 : vector<128x128xf32>
    %9 = arith.truncf %8 : vector<128x128xf32> to vector<128x128xbf16>
    %c0_6 = arith.constant 0 : index
    %c0_7 = arith.constant 0 : index
    %10 = vector.load %arg5[%c0_6, %c0_7] : memref<128x128xbf16, #tpu.memory_space<vmem>>, vector<128x128xbf16>
    %cst_8 = arith.constant dense<0.000000e+00> : vector<128x128xf32>
    %11 = tpu.matmul %9, %10, %cst_8 {dimension_numbers = #tpu.dot_dimension_numbers<[1], [0], [0], [1], [0, 0, 1, 1], [], []>} : vector<128x128xbf16>, vector<128x128xbf16>, vector<128x128xf32> -> vector<128x128xf32>
    %c0_9 = arith.constant 0 : index
    %c0_10 = arith.constant 0 : index
    %12 = vector.load %arg6[%c0_9, %c0_10] : memref<1x128xf32, #tpu.memory_space<vmem>>, vector<1x128xf32>
    %13 = vector.broadcast %12 : vector<1x128xf32> to vector<128x128xf32>
    %14 = arith.addf %11, %13 : vector<128x128xf32>
    %cst_11 = arith.constant 0.000000e+00 : f32
    %15 = vector.broadcast %cst_11 : f32 to vector<128x128xf32>
    %16 = arith.maximumf %14, %15 : vector<128x128xf32>
    %17 = arith.truncf %16 : vector<128x128xf32> to vector<128x128xbf16>
    %c0_12 = arith.constant 0 : index
    %c0_13 = arith.constant 0 : index
    %18 = vector.load %arg7[%c0_12, %c0_13] : memref<128x256xbf16, #tpu.memory_space<vmem>>, vector<128x256xbf16>
    %cst_14 = arith.constant dense<0.000000e+00> : vector<128x256xf32>
    %19 = tpu.matmul %17, %18, %cst_14 {dimension_numbers = #tpu.dot_dimension_numbers<[1], [0], [0], [1], [0, 0, 1, 1], [], []>} : vector<128x128xbf16>, vector<128x256xbf16>, vector<128x256xf32> -> vector<128x256xf32>
    %c0_15 = arith.constant 0 : index
    %c0_16 = arith.constant 0 : index
    %20 = vector.load %arg8[%c0_15, %c0_16] : memref<1x256xf32, #tpu.memory_space<vmem>>, vector<1x256xf32>
    %21 = vector.broadcast %20 : vector<1x256xf32> to vector<128x256xf32>
    %22 = arith.addf %19, %21 : vector<128x256xf32>
    %23 = vector.extract_strided_slice %22 {offsets = [0, 0], sizes = [128, 128], strides = [1, 1]} : vector<128x256xf32> to vector<128x128xf32>
    %24 = vector.extract_strided_slice %22 {offsets = [0, 128], sizes = [128, 128], strides = [1, 1]} : vector<128x256xf32> to vector<128x128xf32>
    %cst_17 = arith.constant 5.000000e-01 : f32
    %25 = vector.broadcast %cst_17 : f32 to vector<128x128xf32>
    %26 = arith.mulf %25, %24 : vector<128x128xf32>
    %27 = math.exp %26 : vector<128x128xf32>
    %c0_18 = arith.constant 0 : index
    %c0_19 = arith.constant 0 : index
    %28 = vector.load %arg2[%c0_18, %c0_19] : memref<128x128xf32, #tpu.memory_space<vmem>>, vector<128x128xf32>
    %29 = arith.mulf %27, %28 : vector<128x128xf32>
    %30 = arith.addf %23, %29 : vector<128x128xf32>
    %c0_20 = arith.constant 0 : index
    %c0_21 = arith.constant 0 : index
    %31 = vector.load %arg15[%c0_20, %c0_21] : memref<128x384xf32, #tpu.memory_space<vmem>>, vector<128x128xf32>
    tpu.vector_store %arg15[%c0_20, %c0_21], %23 {strides = array<i32>} : memref<128x384xf32, #tpu.memory_space<vmem>>, vector<128x128xf32>,
    %c0_22 = arith.constant 0 : index
    %c128 = arith.constant 128 : index
    %32 = vector.load %arg15[%c0_22, %c128] : memref<128x384xf32, #tpu.memory_space<vmem>>, vector<128x128xf32>
    tpu.vector_store %arg15[%c0_22, %c128], %24 {strides = array<i32>} : memref<128x384xf32, #tpu.memory_space<vmem>>, vector<128x128xf32>,
    %c0_23 = arith.constant 0 : index
    %c256 = arith.constant 256 : index
    %33 = vector.load %arg15[%c0_23, %c256] : memref<128x384xf32, #tpu.memory_space<vmem>>, vector<128x128xf32>
    tpu.vector_store %arg15[%c0_23, %c256], %30 {strides = array<i32>} : memref<128x384xf32, #tpu.memory_space<vmem>>, vector<128x128xf32>,
    %34 = arith.truncf %30 : vector<128x128xf32> to vector<128x128xbf16>
    %c0_24 = arith.constant 0 : index
    %c0_25 = arith.constant 0 : index
    %35 = vector.load %arg9[%c0_24, %c0_25] : memref<128x128xbf16, #tpu.memory_space<vmem>>, vector<128x128xbf16>
    %cst_26 = arith.constant dense<0.000000e+00> : vector<128x128xf32>
    %36 = tpu.matmul %34, %35, %cst_26 {dimension_numbers = #tpu.dot_dimension_numbers<[1], [0], [0], [1], [0, 0, 1, 1], [], []>} : vector<128x128xbf16>, vector<128x128xbf16>, vector<128x128xf32> -> vector<128x128xf32>
    %c0_27 = arith.constant 0 : index
    %c0_28 = arith.constant 0 : index
    %37 = vector.load %arg10[%c0_27, %c0_28] : memref<1x128xf32, #tpu.memory_space<vmem>>, vector<1x128xf32>
    %38 = vector.broadcast %37 : vector<1x128xf32> to vector<128x128xf32>
    %39 = arith.addf %36, %38 : vector<128x128xf32>
    %cst_29 = arith.constant 0.000000e+00 : f32
    %40 = vector.broadcast %cst_29 : f32 to vector<128x128xf32>
    %41 = arith.maximumf %39, %40 : vector<128x128xf32>
    %42 = arith.truncf %41 : vector<128x128xf32> to vector<128x128xbf16>
    %c0_30 = arith.constant 0 : index
    %c0_31 = arith.constant 0 : index
    %43 = vector.load %arg11[%c0_30, %c0_31] : memref<128x128xbf16, #tpu.memory_space<vmem>>, vector<128x128xbf16>
    %cst_32 = arith.constant dense<0.000000e+00> : vector<128x128xf32>
    %44 = tpu.matmul %42, %43, %cst_32 {dimension_numbers = #tpu.dot_dimension_numbers<[1], [0], [0], [1], [0, 0, 1, 1], [], []>} : vector<128x128xbf16>, vector<128x128xbf16>, vector<128x128xf32> -> vector<128x128xf32>
    %c0_33 = arith.constant 0 : index
    %c0_34 = arith.constant 0 : index
    %45 = vector.load %arg12[%c0_33, %c0_34] : memref<1x128xf32, #tpu.memory_space<vmem>>, vector<1x128xf32>
    %46 = vector.broadcast %45 : vector<1x128xf32> to vector<128x128xf32>
    %47 = arith.addf %44, %46 : vector<128x128xf32>
    %cst_35 = arith.constant 0.000000e+00 : f32
    %48 = vector.broadcast %cst_35 : f32 to vector<128x128xf32>
    %49 = arith.maximumf %47, %48 : vector<128x128xf32>
    %50 = arith.truncf %49 : vector<128x128xf32> to vector<128x128xbf16>
    %c0_36 = arith.constant 0 : index
    %c0_37 = arith.constant 0 : index
    %51 = vector.load %arg13[%c0_36, %c0_37] : memref<128x512xbf16, #tpu.memory_space<vmem>>, vector<128x512xbf16>
    %cst_38 = arith.constant dense<0.000000e+00> : vector<128x512xf32>
    %52 = tpu.matmul %50, %51, %cst_38 {dimension_numbers = #tpu.dot_dimension_numbers<[1], [0], [0], [1], [0, 0, 1, 1], [], []>} : vector<128x128xbf16>, vector<128x512xbf16>, vector<128x512xf32> -> vector<128x512xf32>
    %c0_39 = arith.constant 0 : index
    %c0_40 = arith.constant 0 : index
    %53 = vector.load %arg14[%c0_39, %c0_40] : memref<1x512xf32, #tpu.memory_space<vmem>>, vector<1x512xf32>
    %54 = vector.broadcast %53 : vector<1x512xf32> to vector<128x512xf32>
    %55 = arith.addf %52, %54 : vector<128x512xf32>
    %c0_41 = arith.constant 0 : index
    %c0_42 = arith.constant 0 : index
    %56 = vector.load %arg16[%c0_41, %c0_42] : memref<128x512xf32, #tpu.memory_space<vmem>>, vector<128x512xf32>
    tpu.vector_store %arg16[%c0_41, %c0_42], %55 {strides = array<i32>} : memref<128x512xf32, #tpu.memory_space<vmem>>, vector<128x512xf32>,
    return
  }
  func.func @transform_0(%arg0: i32) -> (i32, i32) {
    %c0_i32 = arith.constant 0 : i32
    %c0_i32_0 = arith.constant 0 : i32
    return %arg0, %c0_i32 : i32, i32
  }
  func.func @transform_1(%arg0: i32) -> (i32, i32) {
    %c0_i32 = arith.constant 0 : i32
    %c0_i32_0 = arith.constant 0 : i32
    return %arg0, %c0_i32 : i32, i32
  }
  func.func @transform_2(%arg0: i32) -> (i32, i32) {
    %c0_i32 = arith.constant 0 : i32
    %c0_i32_0 = arith.constant 0 : i32
    %c0_i32_1 = arith.constant 0 : i32
    return %c0_i32, %c0_i32_0 : i32, i32
  }
  func.func @transform_3(%arg0: i32) -> (i32, i32) {
    %c0_i32 = arith.constant 0 : i32
    %c0_i32_0 = arith.constant 0 : i32
    %c0_i32_1 = arith.constant 0 : i32
    return %c0_i32, %c0_i32_0 : i32, i32
  }
  func.func @transform_4(%arg0: i32) -> (i32, i32) {
    %c0_i32 = arith.constant 0 : i32
    %c0_i32_0 = arith.constant 0 : i32
    %c0_i32_1 = arith.constant 0 : i32
    return %c0_i32, %c0_i32_0 : i32, i32
  }
  func.func @transform_5(%arg0: i32) -> (i32, i32) {
    %c0_i32 = arith.constant 0 : i32
    %c0_i32_0 = arith.constant 0 : i32
    %c0_i32_1 = arith.constant 0 : i32
    return %c0_i32, %c0_i32_0 : i32, i32
  }
  func.func @transform_6(%arg0: i32) -> (i32, i32) {
    %c0_i32 = arith.constant 0 : i32
    %c0_i32_0 = arith.constant 0 : i32
    %c0_i32_1 = arith.constant 0 : i32
    return %c0_i32, %c0_i32_0 : i32, i32
  }
  func.func @transform_7(%arg0: i32) -> (i32, i32) {
    %c0_i32 = arith.constant 0 : i32
    %c0_i32_0 = arith.constant 0 : i32
    %c0_i32_1 = arith.constant 0 : i32
    return %c0_i32, %c0_i32_0 : i32, i32
  }
  func.func @transform_8(%arg0: i32) -> (i32, i32) {
    %c0_i32 = arith.constant 0 : i32
    %c0_i32_0 = arith.constant 0 : i32
    %c0_i32_1 = arith.constant 0 : i32
    return %c0_i32, %c0_i32_0 : i32, i32
  }
  func.func @transform_9(%arg0: i32) -> (i32, i32) {
    %c0_i32 = arith.constant 0 : i32
    %c0_i32_0 = arith.constant 0 : i32
    %c0_i32_1 = arith.constant 0 : i32
    return %c0_i32, %c0_i32_0 : i32, i32
  }
  func.func @transform_10(%arg0: i32) -> (i32, i32) {
    %c0_i32 = arith.constant 0 : i32
    %c0_i32_0 = arith.constant 0 : i32
    %c0_i32_1 = arith.constant 0 : i32
    return %c0_i32, %c0_i32_0 : i32, i32
  }
  func.func @transform_11(%arg0: i32) -> (i32, i32) {
    %c0_i32 = arith.constant 0 : i32
    %c0_i32_0 = arith.constant 0 : i32
    %c0_i32_1 = arith.constant 0 : i32
    return %c0_i32, %c0_i32_0 : i32, i32
  }
  func.func @transform_12(%arg0: i32) -> (i32, i32) {
    %c0_i32 = arith.constant 0 : i32
    %c0_i32_0 = arith.constant 0 : i32
    %c0_i32_1 = arith.constant 0 : i32
    return %c0_i32, %c0_i32_0 : i32, i32
  }
  func.func @transform_13(%arg0: i32) -> (i32, i32) {
    %c0_i32 = arith.constant 0 : i32
    %c0_i32_0 = arith.constant 0 : i32
    %c0_i32_1 = arith.constant 0 : i32
    return %c0_i32, %c0_i32_0 : i32, i32
  }
  func.func @transform_14(%arg0: i32) -> (i32, i32) {
    %c0_i32 = arith.constant 0 : i32
    %c0_i32_0 = arith.constant 0 : i32
    return %arg0, %c0_i32 : i32, i32
  }
  func.func @transform_15(%arg0: i32) -> (i32, i32) {
    %c0_i32 = arith.constant 0 : i32
    %c0_i32_0 = arith.constant 0 : i32
    return %arg0, %c0_i32 : i32, i32
  }
}

</mosaic_0001>

<llo_original>
// kernel: vae_forward.1
$region0: #{vae_forward.1}
  #allocation0 [shape = 'u32[]', space=smem, size = 0x4, offset = 0x4, fixed_abs, tag = 'smem constant byte address 0x4 - core index']
  #allocation1 [shape = 'u32[144,128]{1,0:T(1,128)}', space=vmem, size = 0x12000, scoped, tag = 'internal scratch']
  %s0 = inlined_call_operand.hbm [shape: f32[256,256], index: 0, kind: input, shape index: {}]
  %s1 = inlined_call_operand.hbm [shape: f32[256,128], index: 1, kind: input, shape index: {}]
  %s2 = inlined_call_operand.hbm [shape: bf16[256,128], index: 2, kind: input, shape index: {}]
  %s3 = inlined_call_operand.hbm [shape: f32[1,128], index: 3, kind: input, shape index: {}]
  %s4 = inlined_call_operand.hbm [shape: bf16[128,128], index: 4, kind: input, shape index: {}]
  %s5 = inlined_call_operand.hbm [shape: f32[1,128], index: 5, kind: input, shape index: {}]
  %s6 = inlined_call_operand.hbm [shape: bf16[128,256], index: 6, kind: input, shape index: {}]
  %s7 = inlined_call_operand.hbm [shape: f32[1,256], index: 7, kind: input, shape index: {}]
  %s8 = inlined_call_operand.hbm [shape: bf16[128,128], index: 8, kind: input, shape index: {}]
  %s9 = inlined_call_operand.hbm [shape: f32[1,128], index: 9, kind: input, shape index: {}]
  %s10 = inlined_call_operand.hbm [shape: bf16[128,128], index: 10, kind: input, shape index: {}]
  %s11 = inlined_call_operand.hbm [shape: f32[1,128], index: 11, kind: input, shape index: {}]
  %s12 = inlined_call_operand.hbm [shape: bf16[128,512], index: 12, kind: input, shape index: {}]
  %s13 = inlined_call_operand.hbm [shape: f32[1,512], index: 13, kind: input, shape index: {}]
  %s14 = inlined_call_operand.hbm [shape: f32[256,384], index: 14, kind: output, shape index: {0}]
  %s15 = inlined_call_operand.hbm [shape: f32[256,512], index: 15, kind: output, shape index: {1}]
  %16 = xla_tuple %s14, %s15
  %s17 = sld [smem:[#allocation0]]
  $region153: #{vae_forward.1} parent=0
    _
  %s19 = ssub.s32 1, %s17
  %s20 = scalar_select 0, %s19, %s17
  $region1: #{vae_forward.1} parent=0
    #allocation2 [shape = 'u8[262144]{0}', space=vmem, size = 0x40000, scoped, tag = 'input window, operand 0']
    #allocation3 [shape = 's32[2]{0}', space=sflag, size = 0x8, scoped, tag = 'scoped memory for vae_forward.1']
    #allocation4 [shape = 's32[2]{0}', space=sflag, size = 0x8, scoped, tag = 'scoped memory for vae_forward.1']
    #allocation5 [shape = 'u8[131072]{0}', space=vmem, size = 0x20000, scoped, tag = 'input window, operand 1']
    #allocation6 [shape = 's32[2]{0}', space=sflag, size = 0x8, scoped, tag = 'scoped memory for vae_forward.1']
    #allocation7 [shape = 'u8[65536]{0}', space=vmem, size = 0x10000, scoped, tag = 'input window, operand 2, single buffered']
    #allocation8 [shape = 'u8[512]{0}', space=vmem, size = 0x400, scoped, tag = 'input window, operand 3, single buffered']
    #allocation9 [shape = 's32[1]{0}', space=sflag, size = 0x4, scoped, tag = 'scoped memory for vae_forward.1']
    #allocation10 [shape = 'u8[32768]{0}', space=vmem, size = 0x8000, scoped, tag = 'input window, operand 4, single buffered']
    #allocation11 [shape = 'u8[512]{0}', space=vmem, size = 0x400, scoped, tag = 'input window, operand 5, single buffered']
    #allocation12 [shape = 's32[1]{0}', space=sflag, size = 0x4, scoped, tag = 'scoped memory for vae_forward.1']
    #allocation13 [shape = 'u8[65536]{0}', space=vmem, size = 0x10000, scoped, tag = 'input window, operand 6, single buffered']
    #allocation14 [shape = 'u8[1024]{0}', space=vmem, size = 0x400, scoped, tag = 'input window, operand 7, single buffered']
    #allocation15 [shape = 's32[1]{0}', space=sflag, size = 0x4, scoped, tag = 'scoped memory for vae_forward.1']
    #allocation16 [shape = 'u8[32768]{0}', space=vmem, size = 0x8000, scoped, tag = 'input window, operand 8, single buffered']
    #allocation17 [shape = 'u8[512]{0}', space=vmem, size = 0x400, scoped, tag = 'input window, operand 9, single buffered']
    #allocation18 [shape = 's32[1]{0}', space=sflag, size = 0x4, scoped, tag = 'scoped memory for vae_forward.1']
    #allocation19 [shape = 'u8[32768]{0}', space=vmem, size = 0x8000, scoped, tag = 'input window, operand 10, single buffered']
    #allocation20 [shape = 'u8[512]{0}', space=vmem, size = 0x400, scoped, tag = 'input window, operand 11, single buffered']
    #allocation21 [shape = 's32[1]{0}', space=sflag, size = 0x4, scoped, tag = 'scoped memory for vae_forward.1']
    #allocation22 [shape = 'u8[131072]{0}', space=vmem, size = 0x20000, scoped, tag = 'input window, operand 12, single buffered']
    #allocation23 [shape = 'u8[2048]{0}', space=vmem, size = 0x800, scoped, tag = 'input window, operand 13, single buffered']
    #allocation24 [shape = 's32[1]{0}', space=sflag, size = 0x4, scoped, tag = 'scoped memory for vae_forward.1']
    #allocation25 [shape = 'u8[393216]{0}', space=vmem, size = 0x60000, scoped, tag = 'output window, operand 0']
    #allocation26 [shape = 'u8[524288]{0}', space=vmem, size = 0x80000, scoped, tag = 'output window, operand 1']
    #allocation27 [shape = 's32[2]{0}', space=sflag, size = 0x8, scoped, tag = 'scoped memory for vae_forward.1']
    %21 = vsyncpa [#allocation3], 0
    %s22 = scalar_lea.sflag [#allocation3], 1
    %23 = vsyncpa %s22, 0
    %24 = vsyncpa [#allocation6], 0
    %s25 = scalar_lea.sflag [#allocation6], 1
    %26 = vsyncpa %s25, 0
    %27 = vsyncpa [#allocation9], 0
    %28 = vsyncpa [#allocation12], 0
    %29 = vsyncpa [#allocation15], 0
    %30 = vsyncpa [#allocation18], 0
    %31 = vsyncpa [#allocation21], 0
    %32 = vsyncpa [#allocation24], 0
    %33 = vsyncpa [#allocation4], 0
    %s34 = scalar_lea.sflag [#allocation4], 1
    %35 = vsyncpa %s34, 0
    %36 = vsyncpa [#allocation27], 0
    %s37 = scalar_lea.sflag [#allocation27], 1
    %38 = vsyncpa %s37, 0
    loop: start=0, step=1, limit=4
    $region2: #{vae_forward.1} parent=1 // loop_pre_header
      _
    $region3: #{vae_forward.1} parent=1 // loop_header
      %s40 = sphi 0, %s44
      %p41 = scmp.ge.s32.totalorder %s40, 4
      %s50 = sphi 0, %s52
      %s53 = sphi 0, %s50
      %s54 = sphi 0, %s53
      %s70 = sphi 0, %s54
      %s76 = sphi 0, %s78
      %s79 = sphi 0, %s76
      %s80 = sphi 0, %s79
      %s96 = sphi 0, %s80
      %s100 = sphi 0, %s100
      %s102 = sphi 0, %s100
      %s103 = sphi 0, %s102
      %s117 = sphi 0, %s103
      %s121 = sphi 0, %s121
      %s123 = sphi 0, %s121
      %s124 = sphi 0, %s123
      %s138 = sphi 0, %s124
      %s142 = sphi 0, %s142
      %s144 = sphi 0, %s142
      %s145 = sphi 0, %s144
      %s159 = sphi 0, %s145
      %s163 = sphi 0, %s163
      %s165 = sphi 0, %s163
      %s166 = sphi 0, %s165
      %s180 = sphi 0, %s166
      %s184 = sphi 0, %s184
      %s186 = sphi 0, %s184
      %s187 = sphi 0, %s186
      %s201 = sphi 0, %s187
      %s205 = sphi 0, %s205
      %s207 = sphi 0, %s205
      %s208 = sphi 0, %s207
      %s222 = sphi 0, %s208
      %s226 = sphi 0, %s226
      %s228 = sphi 0, %s226
      %s229 = sphi 0, %s228
      %s243 = sphi 0, %s229
      %s247 = sphi 0, %s247
      %s249 = sphi 0, %s247
      %s250 = sphi 0, %s249
      %s264 = sphi 0, %s250
      %s268 = sphi 0, %s268
      %s270 = sphi 0, %s268
      %s271 = sphi 0, %s270
      %s285 = sphi 0, %s271
      %s289 = sphi 0, %s289
      %s291 = sphi 0, %s289
      %s292 = sphi 0, %s291
      %s306 = sphi 0, %s292
      %s310 = sphi 0, %s310
      %s312 = sphi 0, %s310
      %s313 = sphi 0, %s312
      %s327 = sphi 0, %s313
      %s331 = sphi 0, %s331
      %s333 = sphi 0, %s331
      %s334 = sphi 0, %s333
      %s348 = sphi 0, %s334
      %s354 = sphi 0, %s356
      %s357 = sphi 0, %s354
      %s358 = sphi 0, %s357
      %s374 = sphi 0, %s358
      %s380 = sphi 0, %s382
      %s383 = sphi 0, %s380
      %s384 = sphi 0, %s383
      %s400 = sphi 0, %s384
    $region4: #{vae_forward.1} parent=1 // loop_header_branch
      %43 = sbr.rel (%p41) target = $region8
    $region5: #{vae_forward.1} parent=1 // loop_body
      %s45 = ssub.s32 %s40, 1
      %s46 = ssub.s32 %s40, 2
      %s47 = sadd.s32 %s40, 1
      %s48 = ssub.s32 %s40, %s47
      %p49 = scmp.eq.s32.totalorder %s48, 0
      %s51 = sadd.s32 %s50, 1
      %s52 = scalar_select %p49, %s50, %s51
      %p55 = pneg %p49
      %p56 = scmp.eq.s32.totalorder %s40, 1
      %p57 = por %p55, %p56
      %p58 = scmp.ne.s32.totalorder %s50, %s53
      %p59 = scmp.eq.s32.totalorder %s40, 0
      %p60 = por %p58, %p59
      %p61 = scmp.ne.s32.totalorder %s50, %s53
      %p62 = scmp.eq.s32.totalorder %s45, 1
      %p63 = por %p61, %p62
      %p64 = scmp.ne.s32.totalorder %s53, %s54
      %p65 = scmp.eq.s32.totalorder %s45, 0
      %p66 = por %p64, %p65
      %p67 = scmp.ne.s32.totalorder %s53, %s54
      %p68 = scmp.eq.s32.totalorder %s46, 1
      %p69 = por %p67, %p68
      %p71 = scmp.ne.s32.totalorder %s54, %s70
      %p72 = scmp.eq.s32.totalorder %s46, 0
      %p73 = por %p71, %p72
      %s74 = ssub.s32 %s40, %s47
      %p75 = scmp.eq.s32.totalorder %s74, 0
      %s77 = sadd.s32 %s76, 1
      %s78 = scalar_select %p75, %s76, %s77
      %p81 = pneg %p75
      %p82 = scmp.eq.s32.totalorder %s40, 1
      %p83 = por %p81, %p82
      %p84 = scmp.ne.s32.totalorder %s76, %s79
      %p85 = scmp.eq.s32.totalorder %s40, 0
      %p86 = por %p84, %p85
      %p87 = scmp.ne.s32.totalorder %s76, %s79
      %p88 = scmp.eq.s32.totalorder %s45, 1
      %p89 = por %p87, %p88
      %p90 = scmp.ne.s32.totalorder %s79, %s80
      %p91 = scmp.eq.s32.totalorder %s45, 0
      %p92 = por %p90, %p91
      %p93 = scmp.ne.s32.totalorder %s79, %s80
      %p94 = scmp.eq.s32.totalorder %s46, 1
      %p95 = por %p93, %p94
      %p97 = scmp.ne.s32.totalorder %s80, %s96
      %p98 = scmp.eq.s32.totalorder %s46, 0
      %p99 = por %p97, %p98
      %s101 = sadd.s32 %s100, 1
      %p104 = scmp.eq.s32.totalorder %s40, 1
      %p105 = scmp.ne.s32.totalorder %s100, %s102
      %p106 = scmp.eq.s32.totalorder %s40, 0
      %p107 = por %p105, %p106
      %p108 = scmp.ne.s32.totalorder %s100, %s102
      %p109 = scmp.eq.s32.totalorder %s45, 1
      %p110 = por %p108, %p109
      %p111 = scmp.ne.s32.totalorder %s102, %s103
      %p112 = scmp.eq.s32.totalorder %s45, 0
      %p113 = por %p111, %p112
      %p114 = scmp.ne.s32.totalorder %s102, %s103
      %p115 = scmp.eq.s32.totalorder %s46, 1
      %p116 = por %p114, %p115
      %p118 = scmp.ne.s32.totalorder %s103, %s117
      %p119 = scmp.eq.s32.totalorder %s46, 0
      %p120 = por %p118, %p119
      %s122 = sadd.s32 %s121, 1
      %p125 = scmp.eq.s32.totalorder %s40, 1
      %p126 = scmp.ne.s32.totalorder %s121, %s123
      %p127 = scmp.eq.s32.totalorder %s40, 0
      %p128 = por %p126, %p127
      %p129 = scmp.ne.s32.totalorder %s121, %s123
      %p130 = scmp.eq.s32.totalorder %s45, 1
      %p131 = por %p129, %p130
      %p132 = scmp.ne.s32.totalorder %s123, %s124
      %p133 = scmp.eq.s32.totalorder %s45, 0
      %p134 = por %p132, %p133
      %p135 = scmp.ne.s32.totalorder %s123, %s124
      %p136 = scmp.eq.s32.totalorder %s46, 1
      %p137 = por %p135, %p136
      %p139 = scmp.ne.s32.totalorder %s124, %s138
      %p140 = scmp.eq.s32.totalorder %s46, 0
      %p141 = por %p139, %p140
      %s143 = sadd.s32 %s142, 1
      %p146 = scmp.eq.s32.totalorder %s40, 1
      %p147 = scmp.ne.s32.totalorder %s142, %s144
      %p148 = scmp.eq.s32.totalorder %s40, 0
      %p149 = por %p147, %p148
      %p150 = scmp.ne.s32.totalorder %s142, %s144
      %p151 = scmp.eq.s32.totalorder %s45, 1
      %p152 = por %p150, %p151
      %p153 = scmp.ne.s32.totalorder %s144, %s145
      %p154 = scmp.eq.s32.totalorder %s45, 0
      %p155 = por %p153, %p154
      %p156 = scmp.ne.s32.totalorder %s144, %s145
      %p157 = scmp.eq.s32.totalorder %s46, 1
      %p158 = por %p156, %p157
      %p160 = scmp.ne.s32.totalorder %s145, %s159
      %p161 = scmp.eq.s32.totalorder %s46, 0
      %p162 = por %p160, %p161
      %s164 = sadd.s32 %s163, 1
      %p167 = scmp.eq.s32.totalorder %s40, 1
      %p168 = scmp.ne.s32.totalorder %s163, %s165
      %p169 = scmp.eq.s32.totalorder %s40, 0
      %p170 = por %p168, %p169
      %p171 = scmp.ne.s32.totalorder %s163, %s165
      %p172 = scmp.eq.s32.totalorder %s45, 1
      %p173 = por %p171, %p172
      %p174 = scmp.ne.s32.totalorder %s165, %s166
      %p175 = scmp.eq.s32.totalorder %s45, 0
      %p176 = por %p174, %p175
      %p177 = scmp.ne.s32.totalorder %s165, %s166
      %p178 = scmp.eq.s32.totalorder %s46, 1
      %p179 = por %p177, %p178
      %p181 = scmp.ne.s32.totalorder %s166, %s180
      %p182 = scmp.eq.s32.totalorder %s46, 0
      %p183 = por %p181, %p182
      %s185 = sadd.s32 %s184, 1
      %p188 = scmp.eq.s32.totalorder %s40, 1
      %p189 = scmp.ne.s32.totalorder %s184, %s186
      %p190 = scmp.eq.s32.totalorder %s40, 0
      %p191 = por %p189, %p190
      %p192 = scmp.ne.s32.totalorder %s184, %s186
      %p193 = scmp.eq.s32.totalorder %s45, 1
      %p194 = por %p192, %p193
      %p195 = scmp.ne.s32.totalorder %s186, %s187
      %p196 = scmp.eq.s32.totalorder %s45, 0
      %p197 = por %p195, %p196
      %p198 = scmp.ne.s32.totalorder %s186, %s187
      %p199 = scmp.eq.s32.totalorder %s46, 1
      %p200 = por %p198, %p199
      %p202 = scmp.ne.s32.totalorder %s187, %s201
      %p203 = scmp.eq.s32.totalorder %s46, 0
      %p204 = por %p202, %p203
      %s206 = sadd.s32 %s205, 1
      %p209 = scmp.eq.s32.totalorder %s40, 1
      %p210 = scmp.ne.s32.totalorder %s205, %s207
      %p211 = scmp.eq.s32.totalorder %s40, 0
      %p212 = por %p210, %p211
      %p213 = scmp.ne.s32.totalorder %s205, %s207
      %p214 = scmp.eq.s32.totalorder %s45, 1
      %p215 = por %p213, %p214
      %p216 = scmp.ne.s32.totalorder %s207, %s208
      %p217 = scmp.eq.s32.totalorder %s45, 0
      %p218 = por %p216, %p217
      %p219 = scmp.ne.s32.totalorder %s207, %s208
      %p220 = scmp.eq.s32.totalorder %s46, 1
      %p221 = por %p219, %p220
      %p223 = scmp.ne.s32.totalorder %s208, %s222
      %p224 = scmp.eq.s32.totalorder %s46, 0
      %p225 = por %p223, %p224
      %s227 = sadd.s32 %s226, 1
      %p230 = scmp.eq.s32.totalorder %s40, 1
      %p231 = scmp.ne.s32.totalorder %s226, %s228
      %p232 = scmp.eq.s32.totalorder %s40, 0
      %p233 = por %p231, %p232
      %p234 = scmp.ne.s32.totalorder %s226, %s228
      %p235 = scmp.eq.s32.totalorder %s45, 1
      %p236 = por %p234, %p235
      %p237 = scmp.ne.s32.totalorder %s228, %s229
      %p238 = scmp.eq.s32.totalorder %s45, 0
      %p239 = por %p237, %p238
      %p240 = scmp.ne.s32.totalorder %s228, %s229
      %p241 = scmp.eq.s32.totalorder %s46, 1
      %p242 = por %p240, %p241
      %p244 = scmp.ne.s32.totalorder %s229, %s243
      %p245 = scmp.eq.s32.totalorder %s46, 0
      %p246 = por %p244, %p245
      %s248 = sadd.s32 %s247, 1
      %p251 = scmp.eq.s32.totalorder %s40, 1
      %p252 = scmp.ne.s32.totalorder %s247, %s249
      %p253 = scmp.eq.s32.totalorder %s40, 0
      %p254 = por %p252, %p253
      %p255 = scmp.ne.s32.totalorder %s247, %s249
      %p256 = scmp.eq.s32.totalorder %s45, 1
      %p257 = por %p255, %p256
      %p258 = scmp.ne.s32.totalorder %s249, %s250
      %p259 = scmp.eq.s32.totalorder %s45, 0
      %p260 = por %p258, %p259
      %p261 = scmp.ne.s32.totalorder %s249, %s250
      %p262 = scmp.eq.s32.totalorder %s46, 1
      %p263 = por %p261, %p262
      %p265 = scmp.ne.s32.totalorder %s250, %s264
      %p266 = scmp.eq.s32.totalorder %s46, 0
      %p267 = por %p265, %p266
      %s269 = sadd.s32 %s268, 1
      %p272 = scmp.eq.s32.totalorder %s40, 1
      %p273 = scmp.ne.s32.totalorder %s268, %s270
      %p274 = scmp.eq.s32.totalorder %s40, 0
      %p275 = por %p273, %p274
      %p276 = scmp.ne.s32.totalorder %s268, %s270
      %p277 = scmp.eq.s32.totalorder %s45, 1
      %p278 = por %p276, %p277
      %p279 = scmp.ne.s32.totalorder %s270, %s271
      %p280 = scmp.eq.s32.totalorder %s45, 0
      %p281 = por %p279, %p280
      %p282 = scmp.ne.s32.totalorder %s270, %s271
      %p283 = scmp.eq.s32.totalorder %s46, 1
      %p284 = por %p282, %p283
      %p286 = scmp.ne.s32.totalorder %s271, %s285
      %p287 = scmp.eq.s32.totalorder %s46, 0
      %p288 = por %p286, %p287
      %s290 = sadd.s32 %s289, 1
      %p293 = scmp.eq.s32.totalorder %s40, 1
      %p294 = scmp.ne.s32.totalorder %s289, %s291
      %p295 = scmp.eq.s32.totalorder %s40, 0
      %p296 = por %p294, %p295
      %p297 = scmp.ne.s32.totalorder %s289, %s291
      %p298 = scmp.eq.s32.totalorder %s45, 1
      %p299 = por %p297, %p298
      %p300 = scmp.ne.s32.totalorder %s291, %s292
      %p301 = scmp.eq.s32.totalorder %s45, 0
      %p302 = por %p300, %p301
      %p303 = scmp.ne.s32.totalorder %s291, %s292
      %p304 = scmp.eq.s32.totalorder %s46, 1
      %p305 = por %p303, %p304
      %p307 = scmp.ne.s32.totalorder %s292, %s306
      %p308 = scmp.eq.s32.totalorder %s46, 0
      %p309 = por %p307, %p308
      %s311 = sadd.s32 %s310, 1
      %p314 = scmp.eq.s32.totalorder %s40, 1
      %p315 = scmp.ne.s32.totalorder %s310, %s312
      %p316 = scmp.eq.s32.totalorder %s40, 0
      %p317 = por %p315, %p316
      %p318 = scmp.ne.s32.totalorder %s310, %s312
      %p319 = scmp.eq.s32.totalorder %s45, 1
      %p320 = por %p318, %p319
      %p321 = scmp.ne.s32.totalorder %s312, %s313
      %p322 = scmp.eq.s32.totalorder %s45, 0
      %p323 = por %p321, %p322
      %p324 = scmp.ne.s32.totalorder %s312, %s313
      %p325 = scmp.eq.s32.totalorder %s46, 1
      %p326 = por %p324, %p325
      %p328 = scmp.ne.s32.totalorder %s313, %s327
      %p329 = scmp.eq.s32.totalorder %s46, 0
      %p330 = por %p328, %p329
      %s332 = sadd.s32 %s331, 1
      %p335 = scmp.eq.s32.totalorder %s40, 1
      %p336 = scmp.ne.s32.totalorder %s331, %s333
      %p337 = scmp.eq.s32.totalorder %s40, 0
      %p338 = por %p336, %p337
      %p339 = scmp.ne.s32.totalorder %s331, %s333
      %p340 = scmp.eq.s32.totalorder %s45, 1
      %p341 = por %p339, %p340
      %p342 = scmp.ne.s32.totalorder %s333, %s334
      %p343 = scmp.eq.s32.totalorder %s45, 0
      %p344 = por %p342, %p343
      %p345 = scmp.ne.s32.totalorder %s333, %s334
      %p346 = scmp.eq.s32.totalorder %s46, 1
      %p347 = por %p345, %p346
      %p349 = scmp.ne.s32.totalorder %s334, %s348
      %p350 = scmp.eq.s32.totalorder %s46, 0
      %p351 = por %p349, %p350
      %s352 = ssub.s32 %s40, %s47
      %p353 = scmp.eq.s32.totalorder %s352, 0
      %s355 = sadd.s32 %s354, 1
      %s356 = scalar_select %p353, %s354, %s355
      %p359 = pneg %p353
      %p360 = scmp.eq.s32.totalorder %s40, 1
      %p361 = por %p359, %p360
      %p362 = scmp.ne.s32.totalorder %s354, %s357
      %p363 = scmp.eq.s32.totalorder %s40, 0
      %p364 = por %p362, %p363
      %p365 = scmp.ne.s32.totalorder %s354, %s357
      %p366 = scmp.eq.s32.totalorder %s45, 1
      %p367 = por %p365, %p366
      %p368 = scmp.ne.s32.totalorder %s357, %s358
      %p369 = scmp.eq.s32.totalorder %s45, 0
      %p370 = por %p368, %p369
      %p371 = scmp.ne.s32.totalorder %s357, %s358
      %p372 = scmp.eq.s32.totalorder %s46, 1
      %p373 = por %p371, %p372
      %p375 = scmp.ne.s32.totalorder %s358, %s374
      %p376 = scmp.eq.s32.totalorder %s46, 0
      %p377 = por %p375, %p376
      %s378 = ssub.s32 %s40, %s47
      %p379 = scmp.eq.s32.totalorder %s378, 0
      %s381 = sadd.s32 %s380, 1
      %s382 = scalar_select %p379, %s380, %s381
      %p385 = pneg %p379
      %p386 = scmp.eq.s32.totalorder %s40, 1
      %p387 = por %p385, %p386
      %p388 = scmp.ne.s32.totalorder %s380, %s383
      %p389 = scmp.eq.s32.totalorder %s40, 0
      %p390 = por %p388, %p389
      %p391 = scmp.ne.s32.totalorder %s380, %s383
      %p392 = scmp.eq.s32.totalorder %s45, 1
      %p393 = por %p391, %p392
      %p394 = scmp.ne.s32.totalorder %s383, %s384
      %p395 = scmp.eq.s32.totalorder %s45, 0
      %p396 = por %p394, %p395
      %p397 = scmp.ne.s32.totalorder %s383, %s384
      %p398 = scmp.eq.s32.totalorder %s46, 1
      %p399 = por %p397, %p398
      %p401 = scmp.ne.s32.totalorder %s384, %s400
      %p402 = scmp.eq.s32.totalorder %s46, 0
      %p403 = por %p401, %p402
      %p404 = scmp.le.s32.totalorder 1, %s40
      %p405 = scmp.lt.s32.totalorder %s40, 3
      %p406 = pnand %p404, %p405
      %p407 = pneg %p406
      // Predicated region
      $region9: #{vae_forward.1} parent=5 // pred_check
        _
      $region10: #{vae_forward.1} parent=5 // pred_check_branch
        %409 = sbr.rel (%p406) target = $region12
      $region11: #{vae_forward.1} parent=5 // pred_region
        %s410 = ssub.s32 %s40, 1
        // Predicated region
        $region13: #{vae_forward.1} parent=11 // pred_check
          %p411 = pneg %p113
        $region14: #{vae_forward.1} parent=11 // pred_check_branch
          %413 = sbr.rel (%p411) target = $region16
        $region15: #{vae_forward.1} parent=11 // pred_region
          %s415 = ssub.s32 2048, 2048
          %416 = vsyncadd [#allocation6], %s415
          %s417 = sshll.u32 [#allocation7], 4
          %s418 = int_to_ptr.vmem [resolvable:$true] %s417
          %423 = dma.hbm_to_vmem [thread:$0]  %s2, 2048, %s418, [#allocation6], 64, 64, 4
        $region16: #{vae_forward.1} parent=11 // pred_fallthru
          _
        // Predicated region
        $region17: #{vae_forward.1} parent=11 // pred_check
          %p424 = pneg %p134
        $region18: #{vae_forward.1} parent=11 // pred_check_branch
          %426 = sbr.rel (%p424) target = $region20
        $region19: #{vae_forward.1} parent=11 // pred_region
          %s428 = ssub.s32 16, 16
          %429 = vsyncadd [#allocation9], %s428
          %s431 = sshll.u32 [#allocation8], 4
          %s432 = int_to_ptr.vmem [resolvable:$true] %s431
          %434 = dma.hbm_to_vmem [thread:$0]  %s3, 16, %s432, [#allocation9]
        $region20: #{vae_forward.1} parent=11 // pred_fallthru
          _
        // Predicated region
        $region21: #{vae_forward.1} parent=11 // pred_check
          %p435 = pneg %p155
        $region22: #{vae_forward.1} parent=11 // pred_check_branch
          %437 = sbr.rel (%p435) target = $region24
        $region23: #{vae_forward.1} parent=11 // pred_region
          %s439 = ssub.s32 1024, 1024
          %440 = vsyncadd [#allocation9], %s439
          %s441 = sshll.u32 [#allocation10], 4
          %s442 = int_to_ptr.vmem [resolvable:$true] %s441
          %447 = dma.hbm_to_vmem [thread:$0]  %s4, 1024, %s442, [#allocation9], 64, 64, 4
        $region24: #{vae_forward.1} parent=11 // pred_fallthru
          _
        // Predicated region
        $region25: #{vae_forward.1} parent=11 // pred_check
          %p448 = pneg %p176
        $region26: #{vae_forward.1} parent=11 // pred_check_branch
          %450 = sbr.rel (%p448) target = $region28
        $region27: #{vae_forward.1} parent=11 // pred_region
          %s452 = ssub.s32 16, 16
          %453 = vsyncadd [#allocation12], %s452
          %s455 = sshll.u32 [#allocation11], 4
          %s456 = int_to_ptr.vmem [resolvable:$true] %s455
          %458 = dma.hbm_to_vmem [thread:$0]  %s5, 16, %s456, [#allocation12]
        $region28: #{vae_forward.1} parent=11 // pred_fallthru
          _
        // Predicated region
        $region29: #{vae_forward.1} parent=11 // pred_check
          %p459 = pneg %p197
        $region30: #{vae_forward.1} parent=11 // pred_check_branch
          %461 = sbr.rel (%p459) target = $region32
        $region31: #{vae_forward.1} parent=11 // pred_region
          %s463 = ssub.s32 2048, 2048
          %464 = vsyncadd [#allocation12], %s463
          %s465 = sshll.u32 [#allocation13], 4
          %s466 = int_to_ptr.vmem [resolvable:$true] %s465
          %471 = dma.hbm_to_vmem [thread:$0]  %s6, 2048, %s466, [#allocation12], 128, 128, 8
        $region32: #{vae_forward.1} parent=11 // pred_fallthru
          _
        // Predicated region
        $region33: #{vae_forward.1} parent=11 // pred_check
          %p472 = pneg %p218
        $region34: #{vae_forward.1} parent=11 // pred_check_branch
          %474 = sbr.rel (%p472) target = $region36
        $region35: #{vae_forward.1} parent=11 // pred_region
          %s476 = ssub.s32 32, 32
          %477 = vsyncadd [#allocation15], %s476
          %s479 = sshll.u32 [#allocation14], 4
          %s480 = int_to_ptr.vmem [resolvable:$true] %s479
          %482 = dma.hbm_to_vmem [thread:$0]  %s7, 32, %s480, [#allocation15]
        $region36: #{vae_forward.1} parent=11 // pred_fallthru
          _
        // Predicated region
        $region37: #{vae_forward.1} parent=11 // pred_check
          %p483 = pneg %p239
        $region38: #{vae_forward.1} parent=11 // pred_check_branch
          %485 = sbr.rel (%p483) target = $region40
        $region39: #{vae_forward.1} parent=11 // pred_region
          %s487 = ssub.s32 1024, 1024
          %488 = vsyncadd [#allocation15], %s487
          %s489 = sshll.u32 [#allocation16], 4
          %s490 = int_to_ptr.vmem [resolvable:$true] %s489
          %495 = dma.hbm_to_vmem [thread:$0]  %s8, 1024, %s490, [#allocation15], 64, 64, 4
        $region40: #{vae_forward.1} parent=11 // pred_fallthru
          _
        // Predicated region
        $region41: #{vae_forward.1} parent=11 // pred_check
          %p496 = pneg %p260
        $region42: #{vae_forward.1} parent=11 // pred_check_branch
          %498 = sbr.rel (%p496) target = $region44
        $region43: #{vae_forward.1} parent=11 // pred_region
          %s500 = ssub.s32 16, 16
          %501 = vsyncadd [#allocation18], %s500
          %s503 = sshll.u32 [#allocation17], 4
          %s504 = int_to_ptr.vmem [resolvable:$true] %s503
          %506 = dma.hbm_to_vmem [thread:$0]  %s9, 16, %s504, [#allocation18]
        $region44: #{vae_forward.1} parent=11 // pred_fallthru
          _
        // Predicated region
        $region45: #{vae_forward.1} parent=11 // pred_check
          %p507 = pneg %p281
        $region46: #{vae_forward.1} parent=11 // pred_check_branch
          %509 = sbr.rel (%p507) target = $region48
        $region47: #{vae_forward.1} parent=11 // pred_region
          %s511 = ssub.s32 1024, 1024
          %512 = vsyncadd [#allocation18], %s511
          %s513 = sshll.u32 [#allocation19], 4
          %s514 = int_to_ptr.vmem [resolvable:$true] %s513
          %519 = dma.hbm_to_vmem [thread:$0]  %s10, 1024, %s514, [#allocation18], 64, 64, 4
        $region48: #{vae_forward.1} parent=11 // pred_fallthru
          _
        // Predicated region
        $region49: #{vae_forward.1} parent=11 // pred_check
          %p520 = pneg %p302
        $region50: #{vae_forward.1} parent=11 // pred_check_branch
          %522 = sbr.rel (%p520) target = $region52
        $region51: #{vae_forward.1} parent=11 // pred_region
          %s524 = ssub.s32 16, 16
          %525 = vsyncadd [#allocation21], %s524
          %s527 = sshll.u32 [#allocation20], 4
          %s528 = int_to_ptr.vmem [resolvable:$true] %s527
          %530 = dma.hbm_to_vmem [thread:$0]  %s11, 16, %s528, [#allocation21]
        $region52: #{vae_forward.1} parent=11 // pred_fallthru
          _
        // Predicated region
        $region53: #{vae_forward.1} parent=11 // pred_check
          %p531 = pneg %p323
        $region54: #{vae_forward.1} parent=11 // pred_check_branch
          %533 = sbr.rel (%p531) target = $region56
        $region55: #{vae_forward.1} parent=11 // pred_region
          %s535 = ssub.s32 4096, 4096
          %536 = vsyncadd [#allocation21], %s535
          %s537 = sshll.u32 [#allocation22], 4
          %s538 = int_to_ptr.vmem [resolvable:$true] %s537
          %543 = dma.hbm_to_vmem [thread:$0]  %s12, 4096, %s538, [#allocation21], 256, 256, 16
        $region56: #{vae_forward.1} parent=11 // pred_fallthru
          _
        // Predicated region
        $region57: #{vae_forward.1} parent=11 // pred_check
          %p544 = pneg %p344
        $region58: #{vae_forward.1} parent=11 // pred_check_branch
          %546 = sbr.rel (%p544) target = $region60
        $region59: #{vae_forward.1} parent=11 // pred_region
          %s548 = ssub.s32 64, 64
          %549 = vsyncadd [#allocation24], %s548
          %s551 = sshll.u32 [#allocation23], 4
          %s552 = int_to_ptr.vmem [resolvable:$true] %s551
          %554 = dma.hbm_to_vmem [thread:$0]  %s13, 64, %s552, [#allocation24]
        $region60: #{vae_forward.1} parent=11 // pred_fallthru
          _
      $region12: #{vae_forward.1} parent=5 // pred_fallthru
        _
      %p555 = scmp.lt.s32.totalorder %s40, 2
      // Predicated region
      $region61: #{vae_forward.1} parent=5 // pred_check
        %p556 = pneg %p555
      $region62: #{vae_forward.1} parent=5 // pred_check_branch
        %558 = sbr.rel (%p556) target = $region64
      $region63: #{vae_forward.1} parent=5 // pred_region
        // Predicated region
        $region65: #{vae_forward.1} parent=63 // pred_check
          %p559 = pneg %p60
        $region66: #{vae_forward.1} parent=63 // pred_check_branch
          %561 = sbr.rel (%p559) target = $region68
        $region67: #{vae_forward.1} parent=63 // pred_region
          %s562 = sand.u32 %s50, 1
          %s563 = scalar_lea.sflag [#allocation3], %s562
          %s564 = sand.u32 %s50, 1
          %s565 = smul.addr %s564, 256
          %s566 = scalar_lea.vmem [#allocation2], %s565
          %s567 = smul.u32 16, %s40
          %s569 = ssub.s32 4096, 4096
          %570 = vsyncadd %s563, %s569
          %s571 = smul.addr %s567, 2
          %s572 = smul.addr %s571, 128
          %s573 = scalar_lea.hbm %s0, %s572
          %s574 = sshll.u32 %s566, 4
          %s575 = int_to_ptr.vmem [resolvable:$true] %s574
          %580 = dma.hbm_to_vmem [thread:$0]  %s573, 4096, %s575, %s563, 256, 256, 16
        $region68: #{vae_forward.1} parent=63 // pred_fallthru
          _
        // Predicated region
        $region69: #{vae_forward.1} parent=63 // pred_check
          %p581 = pneg %p86
        $region70: #{vae_forward.1} parent=63 // pred_check_branch
          %583 = sbr.rel (%p581) target = $region72
        $region71: #{vae_forward.1} parent=63 // pred_region
          %s584 = sand.u32 %s40, 1
          %s585 = scalar_lea.sflag [#allocation6], %s584
          %s586 = sand.u32 %s76, 1
          %s587 = smul.addr %s586, 128
          %s588 = scalar_lea.vmem [#allocation5], %s587
          %s589 = smul.u32 16, %s40
          %s591 = ssub.s32 2048, 2048
          %592 = vsyncadd %s585, %s591
          %s593 = smul.addr %s589, 128
          %s594 = scalar_lea.hbm %s1, %s593
          %s595 = sshll.u32 %s588, 4
          %s596 = int_to_ptr.vmem [resolvable:$true] %s595
          %601 = dma.hbm_to_vmem [thread:$0]  %s594, 2048, %s596, %s585, 128, 128, 8
        $region72: #{vae_forward.1} parent=63 // pred_fallthru
          _
      $region64: #{vae_forward.1} parent=5 // pred_fallthru
        _
      %p602 = scmp.le.s32.totalorder 1, %s40
      %p603 = scmp.lt.s32.totalorder %s40, 3
      %p604 = pnand %p602, %p603
      %p605 = pneg %p604
      // Predicated region
      $region73: #{vae_forward.1} parent=5 // pred_check
        _
      $region74: #{vae_forward.1} parent=5 // pred_check_branch
        %607 = sbr.rel (%p604) target = $region76
      $region75: #{vae_forward.1} parent=5 // pred_region
        %s608 = ssub.s32 %s40, 1
        %s609 = sand.u32 %s53, 1
        %s610 = scalar_lea.sflag [#allocation3], %s609
        %s611 = sand.u32 %s53, 1
        %s612 = smul.addr %s611, 256
        %s613 = scalar_lea.vmem [#allocation2], %s612
        // Predicated region
        $region77: #{vae_forward.1} parent=75 // pred_check
          %p614 = pneg %p66
        $region78: #{vae_forward.1} parent=75 // pred_check_branch
          %616 = sbr.rel (%p614) target = $region80
        $region79: #{vae_forward.1} parent=75 // pred_region
          %617 = dma.done %s610, 4096
        $region80: #{vae_forward.1} parent=75 // pred_fallthru
          _
        %s618 = sand.u32 %s45, 1
        %s619 = scalar_lea.sflag [#allocation6], %s618
        %s620 = sand.u32 %s79, 1
        %s621 = smul.addr %s620, 128
        %s622 = scalar_lea.vmem [#allocation5], %s621
        // Predicated region
        $region81: #{vae_forward.1} parent=75 // pred_check
          %p623 = pneg %p92
        $region82: #{vae_forward.1} parent=75 // pred_check_branch
          %625 = sbr.rel (%p623) target = $region84
        $region83: #{vae_forward.1} parent=75 // pred_region
          %626 = dma.done %s619, 2048
        $region84: #{vae_forward.1} parent=75 // pred_fallthru
          _
        // Predicated region
        $region85: #{vae_forward.1} parent=75 // pred_check
          %p627 = pneg %p113
        $region86: #{vae_forward.1} parent=75 // pred_check_branch
          %629 = sbr.rel (%p627) target = $region88
        $region87: #{vae_forward.1} parent=75 // pred_region
          %630 = dma.done [#allocation6], 2048
        $region88: #{vae_forward.1} parent=75 // pred_fallthru
          _
        // Predicated region
        $region89: #{vae_forward.1} parent=75 // pred_check
          %p631 = pneg %p134
        $region90: #{vae_forward.1} parent=75 // pred_check_branch
          %633 = sbr.rel (%p631) target = $region92
        $region91: #{vae_forward.1} parent=75 // pred_region
          %634 = dma.done [#allocation9], 16
        $region92: #{vae_forward.1} parent=75 // pred_fallthru
          _
        // Predicated region
        $region93: #{vae_forward.1} parent=75 // pred_check
          %p635 = pneg %p155
        $region94: #{vae_forward.1} parent=75 // pred_check_branch
          %637 = sbr.rel (%p635) target = $region96
        $region95: #{vae_forward.1} parent=75 // pred_region
          %638 = dma.done [#allocation9], 1024
        $region96: #{vae_forward.1} parent=75 // pred_fallthru
          _
        // Predicated region
        $region97: #{vae_forward.1} parent=75 // pred_check
          %p639 = pneg %p176
        $region98: #{vae_forward.1} parent=75 // pred_check_branch
          %641 = sbr.rel (%p639) target = $region100
        $region99: #{vae_forward.1} parent=75 // pred_region
          %642 = dma.done [#allocation12], 16
        $region100: #{vae_forward.1} parent=75 // pred_fallthru
          _
        // Predicated region
        $region101: #{vae_forward.1} parent=75 // pred_check
          %p643 = pneg %p197
        $region102: #{vae_forward.1} parent=75 // pred_check_branch
          %645 = sbr.rel (%p643) target = $region104
        $region103: #{vae_forward.1} parent=75 // pred_region
          %646 = dma.done [#allocation12], 2048
        $region104: #{vae_forward.1} parent=75 // pred_fallthru
          _
        // Predicated region
        $region105: #{vae_forward.1} parent=75 // pred_check
          %p647 = pneg %p218
        $region106: #{vae_forward.1} parent=75 // pred_check_branch
          %649 = sbr.rel (%p647) target = $region108
        $region107: #{vae_forward.1} parent=75 // pred_region
          %650 = dma.done [#allocation15], 32
        $region108: #{vae_forward.1} parent=75 // pred_fallthru
          _
        // Predicated region
        $region109: #{vae_forward.1} parent=75 // pred_check
          %p651 = pneg %p239
        $region110: #{vae_forward.1} parent=75 // pred_check_branch
          %653 = sbr.rel (%p651) target = $region112
        $region111: #{vae_forward.1} parent=75 // pred_region
          %654 = dma.done [#allocation15], 1024
        $region112: #{vae_forward.1} parent=75 // pred_fallthru
          _
        // Predicated region
        $region113: #{vae_forward.1} parent=75 // pred_check
          %p655 = pneg %p260
        $region114: #{vae_forward.1} parent=75 // pred_check_branch
          %657 = sbr.rel (%p655) target = $region116
        $region115: #{vae_forward.1} parent=75 // pred_region
          %658 = dma.done [#allocation18], 16
        $region116: #{vae_forward.1} parent=75 // pred_fallthru
          _
        // Predicated region
        $region117: #{vae_forward.1} parent=75 // pred_check
          %p659 = pneg %p281
        $region118: #{vae_forward.1} parent=75 // pred_check_branch
          %661 = sbr.rel (%p659) target = $region120
        $region119: #{vae_forward.1} parent=75 // pred_region
          %662 = dma.done [#allocation18], 1024
        $region120: #{vae_forward.1} parent=75 // pred_fallthru
          _
        // Predicated region
        $region121: #{vae_forward.1} parent=75 // pred_check
          %p663 = pneg %p302
        $region122: #{vae_forward.1} parent=75 // pred_check_branch
          %665 = sbr.rel (%p663) target = $region124
        $region123: #{vae_forward.1} parent=75 // pred_region
          %666 = dma.done [#allocation21], 16
        $region124: #{vae_forward.1} parent=75 // pred_fallthru
          _
        // Predicated region
        $region125: #{vae_forward.1} parent=75 // pred_check
          %p667 = pneg %p323
        $region126: #{vae_forward.1} parent=75 // pred_check_branch
          %669 = sbr.rel (%p667) target = $region128
        $region127: #{vae_forward.1} parent=75 // pred_region
          %670 = dma.done [#allocation21], 4096
        $region128: #{vae_forward.1} parent=75 // pred_fallthru
          _
        // Predicated region
        $region129: #{vae_forward.1} parent=75 // pred_check
          %p671 = pneg %p344
        $region130: #{vae_forward.1} parent=75 // pred_check_branch
          %673 = sbr.rel (%p671) target = $region132
        $region131: #{vae_forward.1} parent=75 // pred_region
          %674 = dma.done [#allocation24], 64
        $region132: #{vae_forward.1} parent=75 // pred_fallthru
          _
        %s675 = sand.u32 %s53, 1
        %s676 = scalar_lea.sflag [#allocation3], %s675
        %s677 = sand.u32 %s53, 1
        %s678 = smul.addr %s677, 256
        %s679 = scalar_lea.vmem [#allocation2], %s678
        %p680 = pneg %p66
        %p681 = pneg %p63
        %s682 = sand.u32 %s45, 1
        %s683 = scalar_lea.sflag [#allocation6], %s682
        %s684 = sand.u32 %s79, 1
        %s685 = smul.addr %s684, 128
        %s686 = scalar_lea.vmem [#allocation5], %s685
        %p687 = pneg %p92
        %p688 = pneg %p89
        %p689 = pneg %p113
        %p690 = pneg %p110
        %p691 = pneg %p134
        %p692 = pneg %p131
        %p693 = pneg %p155
        %p694 = pneg %p152
        %p695 = pneg %p176
        %p696 = pneg %p173
        %p697 = pneg %p197
        %p698 = pneg %p194
        %p699 = pneg %p218
        %p700 = pneg %p215
        %p701 = pneg %p239
        %p702 = pneg %p236
        %p703 = pneg %p260
        %p704 = pneg %p257
        %p705 = pneg %p281
        %p706 = pneg %p278
        %p707 = pneg %p302
        %p708 = pneg %p299
        %p709 = pneg %p323
        %p710 = pneg %p320
        %p711 = pneg %p344
        %p712 = pneg %p341
        %p713 = pneg %p370
        %p714 = pneg %p367
        %s715 = sand.u32 %s357, 1
        %s716 = scalar_lea.sflag [#allocation4], %s715
        %s717 = sand.u32 %s357, 1
        %s718 = smul.addr %s717, 384
        %s719 = scalar_lea.vmem [#allocation25], %s718
        %p720 = pneg %p396
        %p721 = pneg %p393
        %s722 = sand.u32 %s383, 1
        %s723 = scalar_lea.sflag [#allocation27], %s722
        %s724 = sand.u32 %s383, 1
        %s725 = smul.addr %s724, 512
        %s726 = scalar_lea.vmem [#allocation26], %s725
        %s727 = smul.u32 16, %s45
        %s728 = smul.u32 16, %s45
        %s729 = smul.u32 16, %s45
        %s730 = smul.u32 16, %s45
        %v732 = vld [vmem:[%s613] sm:$0xff]
        %v733 = vld [vmem:[%s613 + $0x8] sm:$0xff]
        %v734 = vld [vmem:[%s613 + $0x10] sm:$0xff]
        %v735 = vld [vmem:[%s613 + $0x18] sm:$0xff]
        %v736 = vld [vmem:[%s613 + $0x20] sm:$0xff]
        %v737 = vld [vmem:[%s613 + $0x28] sm:$0xff]
        %v738 = vld [vmem:[%s613 + $0x30] sm:$0xff]
        %v739 = vld [vmem:[%s613 + $0x38] sm:$0xff]
        %v740 = vld [vmem:[%s613 + $0x40] sm:$0xff]
        %v741 = vld [vmem:[%s613 + $0x48] sm:$0xff]
        %v742 = vld [vmem:[%s613 + $0x50] sm:$0xff]
        %v743 = vld [vmem:[%s613 + $0x58] sm:$0xff]
        %v744 = vld [vmem:[%s613 + $0x60] sm:$0xff]
        %v745 = vld [vmem:[%s613 + $0x68] sm:$0xff]
        %v746 = vld [vmem:[%s613 + $0x70] sm:$0xff]
        %v747 = vld [vmem:[%s613 + $0x78] sm:$0xff]
        %v748 = vld [vmem:[%s613 + $0x80] sm:$0xff]
        %v749 = vld [vmem:[%s613 + $0x88] sm:$0xff]
        %v750 = vld [vmem:[%s613 + $0x90] sm:$0xff]
        %v751 = vld [vmem:[%s613 + $0x98] sm:$0xff]
        %v752 = vld [vmem:[%s613 + $0xa0] sm:$0xff]
        %v753 = vld [vmem:[%s613 + $0xa8] sm:$0xff]
        %v754 = vld [vmem:[%s613 + $0xb0] sm:$0xff]
        %v755 = vld [vmem:[%s613 + $0xb8] sm:$0xff]
        %v756 = vld [vmem:[%s613 + $0xc0] sm:$0xff]
        %v757 = vld [vmem:[%s613 + $0xc8] sm:$0xff]
        %v758 = vld [vmem:[%s613 + $0xd0] sm:$0xff]
        %v759 = vld [vmem:[%s613 + $0xd8] sm:$0xff]
        %v760 = vld [vmem:[%s613 + $0xe0] sm:$0xff]
        %v761 = vld [vmem:[%s613 + $0xe8] sm:$0xff]
        %v762 = vld [vmem:[%s613 + $0xf0] sm:$0xff]
        %v763 = vld [vmem:[%s613 + $0xf8] sm:$0xff]
        %v764 = vpack.c.bf16 %v734, %v732
        %v765 = vpack.c.bf16 %v735, %v733
        %v766 = vpack.c.bf16 %v738, %v736
        %v767 = vpack.c.bf16 %v739, %v737
        %v768 = vpack.c.bf16 %v742, %v740
        %v769 = vpack.c.bf16 %v743, %v741
        %v770 = vpack.c.bf16 %v746, %v744
        %v771 = vpack.c.bf16 %v747, %v745
        %v772 = vpack.c.bf16 %v750, %v748
        %v773 = vpack.c.bf16 %v751, %v749
        %v774 = vpack.c.bf16 %v754, %v752
        %v775 = vpack.c.bf16 %v755, %v753
        %v776 = vpack.c.bf16 %v758, %v756
        %v777 = vpack.c.bf16 %v759, %v757
        %v778 = vpack.c.bf16 %v762, %v760
        %v779 = vpack.c.bf16 %v763, %v761
        %v780 = vld [vmem:[#allocation7] sm:$0xf]
        %v781 = vld [vmem:[#allocation7 + $0x4] sm:$0xf]
        %v782 = vld [vmem:[#allocation7 + $0x8] sm:$0xf]
        %v783 = vld [vmem:[#allocation7 + $0xc] sm:$0xf]
        %v784 = vld [vmem:[#allocation7 + $0x10] sm:$0xf]
        %v785 = vld [vmem:[#allocation7 + $0x14] sm:$0xf]
        %v786 = vld [vmem:[#allocation7 + $0x18] sm:$0xf]
        %v787 = vld [vmem:[#allocation7 + $0x1c] sm:$0xf]
        %v788 = vld [vmem:[#allocation7 + $0x20] sm:$0xf]
        %v789 = vld [vmem:[#allocation7 + $0x24] sm:$0xf]
        %v790 = vld [vmem:[#allocation7 + $0x28] sm:$0xf]
        %v791 = vld [vmem:[#allocation7 + $0x2c] sm:$0xf]
        %v792 = vld [vmem:[#allocation7 + $0x30] sm:$0xf]
        %v793 = vld [vmem:[#allocation7 + $0x34] sm:$0xf]
        %v794 = vld [vmem:[#allocation7 + $0x38] sm:$0xf]
        %v795 = vld [vmem:[#allocation7 + $0x3c] sm:$0xf]
        %v796 = vld [vmem:[#allocation7 + $0x40] sm:$0xf]
        %v797 = vld [vmem:[#allocation7 + $0x44] sm:$0xf]
        %v798 = vld [vmem:[#allocation7 + $0x48] sm:$0xf]
        %v799 = vld [vmem:[#allocation7 + $0x4c] sm:$0xf]
        %v800 = vld [vmem:[#allocation7 + $0x50] sm:$0xf]
        %v801 = vld [vmem:[#allocation7 + $0x54] sm:$0xf]
        %v802 = vld [vmem:[#allocation7 + $0x58] sm:$0xf]
        %v803 = vld [vmem:[#allocation7 + $0x5c] sm:$0xf]
        %v804 = vld [vmem:[#allocation7 + $0x60] sm:$0xf]
        %v805 = vld [vmem:[#allocation7 + $0x64] sm:$0xf]
        %v806 = vld [vmem:[#allocation7 + $0x68] sm:$0xf]
        %v807 = vld [vmem:[#allocation7 + $0x6c] sm:$0xf]
        %v808 = vld [vmem:[#allocation7 + $0x70] sm:$0xf]
        %v809 = vld [vmem:[#allocation7 + $0x74] sm:$0xf]
        %v810 = vld [vmem:[#allocation7 + $0x78] sm:$0xf]
        %v811 = vld [vmem:[#allocation7 + $0x7c] sm:$0xf]
        %v812 = vld [vmem:[#allocation8] sm:$0x1]
        %v814 = vlaneseq
        %v815 = vshrl.u32 %v814, 7
        %v816 = vsub.s32 0, %v815
        %v817 = vrot.slane %v812, %v816
        %v851 = vunpack.c.l.b16 %v780
        %v852 = vunpack.c.l.b16 %v781
        %v853 = vunpack.c.l.b16 %v782
        %v854 = vunpack.c.l.b16 %v783
        %v855 = vunpack.c.l.b16 %v784
        %v856 = vunpack.c.l.b16 %v785
        %v857 = vunpack.c.l.b16 %v786
        %v858 = vunpack.c.l.b16 %v787
        %v859 = vunpack.c.l.b16 %v788
        %v860 = vunpack.c.l.b16 %v789
        %v861 = vunpack.c.l.b16 %v790
        %v862 = vunpack.c.l.b16 %v791
        %v863 = vunpack.c.l.b16 %v792
        %v864 = vunpack.c.l.b16 %v793
        %v865 = vunpack.c.l.b16 %v794
        %v866 = vunpack.c.l.b16 %v795
        %v867 = vunpack.c.l.b16 %v796
        %v868 = vunpack.c.l.b16 %v797
        %v869 = vunpack.c.l.b16 %v798
        %v870 = vunpack.c.l.b16 %v799
        %v871 = vunpack.c.l.b16 %v800
        %v872 = vunpack.c.l.b16 %v801
        %v873 = vunpack.c.l.b16 %v802
        %v874 = vunpack.c.l.b16 %v803
        %v875 = vunpack.c.l.b16 %v804
        %v876 = vunpack.c.l.b16 %v805
        %v877 = vunpack.c.l.b16 %v806
        %v878 = vunpack.c.l.b16 %v807
        %v879 = vunpack.c.l.b16 %v808
        %v880 = vunpack.c.l.b16 %v809
        %v881 = vunpack.c.l.b16 %v810
        %v882 = vunpack.c.l.b16 %v811
        %v883 = vpack.c.b16 %v852, %v851
        %v884 = vpack.c.b16 %v854, %v853
        %v885 = vpack.c.b16 %v856, %v855
        %v886 = vpack.c.b16 %v858, %v857
        %v887 = vpack.c.b16 %v860, %v859
        %v888 = vpack.c.b16 %v862, %v861
        %v889 = vpack.c.b16 %v864, %v863
        %v890 = vpack.c.b16 %v866, %v865
        %v891 = vpack.c.b16 %v868, %v867
        %v892 = vpack.c.b16 %v870, %v869
        %v893 = vpack.c.b16 %v872, %v871
        %v894 = vpack.c.b16 %v874, %v873
        %v895 = vpack.c.b16 %v876, %v875
        %v896 = vpack.c.b16 %v878, %v877
        %v897 = vpack.c.b16 %v880, %v879
        %v898 = vpack.c.b16 %v882, %v881
        %915 = vmatprep.subr.bf16.mxu0 0
        %916 = vmatpush1.bf16.msra.mxu0 %v883
        %917 = vmatprep.subr.bf16.mxu0 0
        %918 = vmatpush1.bf16.msra.mxu0 %v884
        %919 = vmatprep.subr.bf16.mxu0 0
        %920 = vmatpush1.bf16.msra.mxu0 %v885
        %921 = vmatprep.subr.bf16.mxu0 0
        %922 = vmatpush1.bf16.msra.mxu0 %v886
        %923 = vmatprep.subr.bf16.mxu0 0
        %924 = vmatpush1.bf16.msra.mxu0 %v887
        %925 = vmatprep.subr.bf16.mxu0 0
        %926 = vmatpush1.bf16.msra.mxu0 %v888
        %927 = vmatprep.subr.bf16.mxu0 0
        %928 = vmatpush1.bf16.msra.mxu0 %v889
        %929 = vmatprep.subr.bf16.mxu0 0
        %930 = vmatpush1.bf16.msra.mxu0 %v890
        %931 = vmatprep.subr.bf16.mxu0 0
        %932 = vmatpush1.bf16.msra.mxu0 %v891
        %933 = vmatprep.subr.bf16.mxu0 0
        %934 = vmatpush1.bf16.msra.mxu0 %v892
        %935 = vmatprep.subr.bf16.mxu0 0
        %936 = vmatpush1.bf16.msra.mxu0 %v893
        %937 = vmatprep.subr.bf16.mxu0 0
        %938 = vmatpush1.bf16.msra.mxu0 %v894
        %939 = vmatprep.subr.bf16.mxu0 0
        %940 = vmatpush1.bf16.msra.mxu0 %v895
        %941 = vmatprep.subr.bf16.mxu0 0
        %942 = vmatpush1.bf16.msra.mxu0 %v896
        %943 = vmatprep.subr.bf16.mxu0 0
        %944 = vmatpush1.bf16.msra.mxu0 %v897
        %945 = vmatprep.subr.bf16.mxu0 0
        %946 = vmatpush1.bf16.msra.mxu0 %v898
        %947 = vmatprep.mubr.bf16.mxu0 %v765
        %948 = vmatmul.mubr.bf16.gmra.mrb[0].mxu0 %v764
        %v949 = vpop.f32.mrb[0].mxu0
        %v950 = vadd.f32 %v817, %v949
        %v951 = vpop.f32.mrb[0].mxu0
        %v952 = vpop.f32.mrb[0].mxu0
        %v953 = vadd.f32 %v817, %v952
        %v954 = vpop.f32.mrb[0].mxu0
        %955 = vmatprep.mubr.bf16.mxu0 %v767
        %956 = vmatmul.mubr.bf16.gmra.mrb[0].mxu0 %v766
        %v957 = vpop.f32.mrb[0].mxu0
        %v958 = vadd.f32 %v817, %v957
        %v959 = vpop.f32.mrb[0].mxu0
        %v960 = vpop.f32.mrb[0].mxu0
        %v961 = vadd.f32 %v817, %v960
        %v962 = vpop.f32.mrb[0].mxu0
        %963 = vmatprep.mubr.bf16.mxu0 %v769
        %964 = vmatmul.mubr.bf16.gmra.mrb[0].mxu0 %v768
        %v965 = vpop.f32.mrb[0].mxu0
        %v966 = vadd.f32 %v817, %v965
        %v967 = vpop.f32.mrb[0].mxu0
        %v968 = vpop.f32.mrb[0].mxu0
        %v969 = vadd.f32 %v817, %v968
        %v970 = vpop.f32.mrb[0].mxu0
        %971 = vmatprep.mubr.bf16.mxu0 %v771
        %972 = vmatmul.mubr.bf16.gmra.mrb[0].mxu0 %v770
        %v973 = vpop.f32.mrb[0].mxu0
        %v974 = vadd.f32 %v817, %v973
        %v975 = vpop.f32.mrb[0].mxu0
        %v976 = vpop.f32.mrb[0].mxu0
        %v977 = vadd.f32 %v817, %v976
        %v978 = vpop.f32.mrb[0].mxu0
        %979 = vmatprep.mubr.bf16.mxu0 %v773
        %980 = vmatmul.mubr.bf16.gmra.mrb[0].mxu0 %v772
        %v981 = vpop.f32.mrb[0].mxu0
        %v982 = vadd.f32 %v817, %v981
        %v983 = vpop.f32.mrb[0].mxu0
        %v984 = vpop.f32.mrb[0].mxu0
        %v985 = vadd.f32 %v817, %v984
        %v986 = vpop.f32.mrb[0].mxu0
        %987 = vmatprep.mubr.bf16.mxu0 %v775
        %988 = vmatmul.mubr.bf16.gmra.mrb[0].mxu0 %v774
        %v989 = vpop.f32.mrb[0].mxu0
        %v990 = vadd.f32 %v817, %v989
        %v991 = vpop.f32.mrb[0].mxu0
        %v992 = vpop.f32.mrb[0].mxu0
        %v993 = vadd.f32 %v817, %v992
        %v994 = vpop.f32.mrb[0].mxu0
        %995 = vmatprep.mubr.bf16.mxu0 %v777
        %996 = vmatmul.mubr.bf16.gmra.mrb[0].mxu0 %v776
        %v997 = vpop.f32.mrb[0].mxu0
        %v998 = vadd.f32 %v817, %v997
        %v999 = vpop.f32.mrb[0].mxu0
        %v1000 = vpop.f32.mrb[0].mxu0
        %v1001 = vadd.f32 %v817, %v1000
        %v1002 = vpop.f32.mrb[0].mxu0
        %1003 = vmatprep.mubr.bf16.mxu0 %v779
        %1004 = vmatmul.mubr.bf16.gmra.mrb[0].mxu0 %v778
        %v1005 = vpop.f32.mrb[0].mxu0
        %v1006 = vadd.f32 %v817, %v1005
        %v1007 = vpop.f32.mrb[0].mxu0
        %v1008 = vpop.f32.mrb[0].mxu0
        %v1009 = vadd.f32 %v817, %v1008
        %v1010 = vpop.f32.mrb[0].mxu0
        %1011 = vdwg.mxu0
        %v1012 = vmax.f32 %v950, 0.0
        %v1013 = vmax.f32 %v953, 0.0
        %v1014 = vmax.f32 %v958, 0.0
        %v1015 = vmax.f32 %v961, 0.0
        %v1016 = vmax.f32 %v966, 0.0
        %v1017 = vmax.f32 %v969, 0.0
        %v1018 = vmax.f32 %v974, 0.0
        %v1019 = vmax.f32 %v977, 0.0
        %v1020 = vmax.f32 %v982, 0.0
        %v1021 = vmax.f32 %v985, 0.0
        %v1022 = vmax.f32 %v990, 0.0
        %v1023 = vmax.f32 %v993, 0.0
        %v1024 = vmax.f32 %v998, 0.0
        %v1025 = vmax.f32 %v1001, 0.0
        %v1026 = vmax.f32 %v1006, 0.0
        %v1027 = vmax.f32 %v1009, 0.0
        %v1028 = vpack.c.bf16 %v1013, %v1012
        %v1029 = vpack.c.bf16 %v1015, %v1014
        %v1030 = vpack.c.bf16 %v1017, %v1016
        %v1031 = vpack.c.bf16 %v1019, %v1018
        %v1032 = vpack.c.bf16 %v1021, %v1020
        %v1033 = vpack.c.bf16 %v1023, %v1022
        %v1034 = vpack.c.bf16 %v1025, %v1024
        %v1035 = vpack.c.bf16 %v1027, %v1026
        %v1036 = vld [vmem:[#allocation10] sm:$0xf]
        %v1037 = vld [vmem:[#allocation10 + $0x4] sm:$0xf]
        %v1038 = vld [vmem:[#allocation10 + $0x8] sm:$0xf]
        %v1039 = vld [vmem:[#allocation10 + $0xc] sm:$0xf]
        %v1040 = vld [vmem:[#allocation10 + $0x10] sm:$0xf]
        %v1041 = vld [vmem:[#allocation10 + $0x14] sm:$0xf]
        %v1042 = vld [vmem:[#allocation10 + $0x18] sm:$0xf]
        %v1043 = vld [vmem:[#allocation10 + $0x1c] sm:$0xf]
        %v1044 = vld [vmem:[#allocation10 + $0x20] sm:$0xf]
        %v1045 = vld [vmem:[#allocation10 + $0x24] sm:$0xf]
        %v1046 = vld [vmem:[#allocation10 + $0x28] sm:$0xf]
        %v1047 = vld [vmem:[#allocation10 + $0x2c] sm:$0xf]
        %v1048 = vld [vmem:[#allocation10 + $0x30] sm:$0xf]
        %v1049 = vld [vmem:[#allocation10 + $0x34] sm:$0xf]
        %v1050 = vld [vmem:[#allocation10 + $0x38] sm:$0xf]
        %v1051 = vld [vmem:[#allocation10 + $0x3c] sm:$0xf]
        %v1052 = vld [vmem:[#allocation11] sm:$0x1]
        %v1054 = vlaneseq
        %v1055 = vshrl.u32 %v1054, 7
        %v1056 = vsub.s32 0, %v1055
        %v1057 = vrot.slane %v1052, %v1056
        %v1075 = vunpack.c.l.b16 %v1036
        %v1076 = vunpack.c.l.b16 %v1037
        %v1077 = vunpack.c.l.b16 %v1038
        %v1078 = vunpack.c.l.b16 %v1039
        %v1079 = vunpack.c.l.b16 %v1040
        %v1080 = vunpack.c.l.b16 %v1041
        %v1081 = vunpack.c.l.b16 %v1042
        %v1082 = vunpack.c.l.b16 %v1043
        %v1083 = vunpack.c.l.b16 %v1044
        %v1084 = vunpack.c.l.b16 %v1045
        %v1085 = vunpack.c.l.b16 %v1046
        %v1086 = vunpack.c.l.b16 %v1047
        %v1087 = vunpack.c.l.b16 %v1048
        %v1088 = vunpack.c.l.b16 %v1049
        %v1089 = vunpack.c.l.b16 %v1050
        %v1090 = vunpack.c.l.b16 %v1051
        %v1091 = vpack.c.b16 %v1076, %v1075
        %v1092 = vpack.c.b16 %v1078, %v1077
        %v1093 = vpack.c.b16 %v1080, %v1079
        %v1094 = vpack.c.b16 %v1082, %v1081
        %v1095 = vpack.c.b16 %v1084, %v1083
        %v1096 = vpack.c.b16 %v1086, %v1085
        %v1097 = vpack.c.b16 %v1088, %v1087
        %v1098 = vpack.c.b16 %v1090, %v1089
        %1107 = vmatprep.subr.bf16.mxu0 0
        %1108 = vmatpush1.bf16.msra.mxu0 %v1091
        %1109 = vmatprep.subr.bf16.mxu0 0
        %1110 = vmatpush1.bf16.msra.mxu0 %v1092
        %1111 = vmatprep.subr.bf16.mxu0 0
        %1112 = vmatpush1.bf16.msra.mxu0 %v1093
        %1113 = vmatprep.subr.bf16.mxu0 0
        %1114 = vmatpush1.bf16.msra.mxu0 %v1094
        %1115 = vmatprep.subr.bf16.mxu0 0
        %1116 = vmatpush1.bf16.msra.mxu0 %v1095
        %1117 = vmatprep.subr.bf16.mxu0 0
        %1118 = vmatpush1.bf16.msra.mxu0 %v1096
        %1119 = vmatprep.subr.bf16.mxu0 0
        %1120 = vmatpush1.bf16.msra.mxu0 %v1097
        %1121 = vmatprep.subr.bf16.mxu0 0
        %1122 = vmatpush1.bf16.msra.mxu0 %v1098
        %1123 = vmatprep.subr.bf16.mxu0 0
        %1124 = vmatpush1.bf16.msra.mxu0 0
        %1125 = vmatprep.subr.bf16.mxu0 0
        %1126 = vmatpush1.bf16.msra.mxu0 0
        %1127 = vmatprep.subr.bf16.mxu0 0
        %1128 = vmatpush1.bf16.msra.mxu0 0
        %1129 = vmatprep.subr.bf16.mxu0 0
        %1130 = vmatpush1.bf16.msra.mxu0 0
        %1131 = vmatprep.subr.bf16.mxu0 0
        %1132 = vmatpush1.bf16.msra.mxu0 0
        %1133 = vmatprep.subr.bf16.mxu0 0
        %1134 = vmatpush1.bf16.msra.mxu0 0
        %1135 = vmatprep.subr.bf16.mxu0 0
        %1136 = vmatpush1.bf16.msra.mxu0 0
        %1137 = vmatprep.subr.bf16.mxu0 0
        %1138 = vmatpush1.bf16.msra.mxu0 0
        %1139 = vmatprep.mubr.bf16.mxu0 0
        %1140 = vmatmul.mubr.bf16.gmra.mrb[0].mxu0 %v1028
        %v1141 = vpop.f32.mrb[0].mxu0
        %v1142 = vadd.f32 %v1057, %v1141
        %v1143 = vpop.f32.mrb[0].mxu0
        %v1144 = vpop.f32.mrb[0].mxu0
        %v1145 = vadd.f32 %v1057, %v1144
        %v1146 = vpop.f32.mrb[0].mxu0
        %1147 = vmatprep.mubr.bf16.mxu0 0
        %1148 = vmatmul.mubr.bf16.gmra.mrb[0].mxu0 %v1029
        %v1149 = vpop.f32.mrb[0].mxu0
        %v1150 = vadd.f32 %v1057, %v1149
        %v1151 = vpop.f32.mrb[0].mxu0
        %v1152 = vpop.f32.mrb[0].mxu0
        %v1153 = vadd.f32 %v1057, %v1152
        %v1154 = vpop.f32.mrb[0].mxu0
        %1155 = vmatprep.mubr.bf16.mxu0 0
        %1156 = vmatmul.mubr.bf16.gmra.mrb[0].mxu0 %v1030
        %v1157 = vpop.f32.mrb[0].mxu0
        %v1158 = vadd.f32 %v1057, %v1157
        %v1159 = vpop.f32.mrb[0].mxu0
        %v1160 = vpop.f32.mrb[0].mxu0
        %v1161 = vadd.f32 %v1057, %v1160
        %v1162 = vpop.f32.mrb[0].mxu0
        %1163 = vmatprep.mubr.bf16.mxu0 0
        %1164 = vmatmul.mubr.bf16.gmra.mrb[0].mxu0 %v1031
        %v1165 = vpop.f32.mrb[0].mxu0
        %v1166 = vadd.f32 %v1057, %v1165
        %v1167 = vpop.f32.mrb[0].mxu0
        %v1168 = vpop.f32.mrb[0].mxu0
        %v1169 = vadd.f32 %v1057, %v1168
        %v1170 = vpop.f32.mrb[0].mxu0
        %1171 = vmatprep.mubr.bf16.mxu0 0
        %1172 = vmatmul.mubr.bf16.gmra.mrb[0].mxu0 %v1032
        %v1173 = vpop.f32.mrb[0].mxu0
        %v1174 = vadd.f32 %v1057, %v1173
        %v1175 = vpop.f32.mrb[0].mxu0
        %v1176 = vpop.f32.mrb[0].mxu0
        %v1177 = vadd.f32 %v1057, %v1176
        %v1178 = vpop.f32.mrb[0].mxu0
        %1179 = vmatprep.mubr.bf16.mxu0 0
        %1180 = vmatmul.mubr.bf16.gmra.mrb[0].mxu0 %v1033
        %v1181 = vpop.f32.mrb[0].mxu0
        %v1182 = vadd.f32 %v1057, %v1181
        %v1183 = vpop.f32.mrb[0].mxu0
        %v1184 = vpop.f32.mrb[0].mxu0
        %v1185 = vadd.f32 %v1057, %v1184
        %v1186 = vpop.f32.mrb[0].mxu0
        %1187 = vmatprep.mubr.bf16.mxu0 0
        %1188 = vmatmul.mubr.bf16.gmra.mrb[0].mxu0 %v1034
        %v1189 = vpop.f32.mrb[0].mxu0
        %v1190 = vadd.f32 %v1057, %v1189
        %v1191 = vpop.f32.mrb[0].mxu0
        %v1192 = vpop.f32.mrb[0].mxu0
        %v1193 = vadd.f32 %v1057, %v1192
        %v1194 = vpop.f32.mrb[0].mxu0
        %1195 = vmatprep.mubr.bf16.mxu0 0
        %1196 = vmatmul.mubr.bf16.gmra.mrb[0].mxu0 %v1035
        %v1197 = vpop.f32.mrb[0].mxu0
        %v1198 = vadd.f32 %v1057, %v1197
        %v1199 = vpop.f32.mrb[0].mxu0
        %v1200 = vpop.f32.mrb[0].mxu0
        %v1201 = vadd.f32 %v1057, %v1200
        %v1202 = vpop.f32.mrb[0].mxu0
        %1203 = vdwg.mxu0
        %v1204 = vmax.f32 %v1142, 0.0
        %v1205 = vmax.f32 %v1145, 0.0
        %v1206 = vmax.f32 %v1150, 0.0
        %v1207 = vmax.f32 %v1153, 0.0
        %v1208 = vmax.f32 %v1158, 0.0
        %v1209 = vmax.f32 %v1161, 0.0
        %v1210 = vmax.f32 %v1166, 0.0
        %v1211 = vmax.f32 %v1169, 0.0
        %v1212 = vmax.f32 %v1174, 0.0
        %v1213 = vmax.f32 %v1177, 0.0
        %v1214 = vmax.f32 %v1182, 0.0
        %v1215 = vmax.f32 %v1185, 0.0
        %v1216 = vmax.f32 %v1190, 0.0
        %v1217 = vmax.f32 %v1193, 0.0
        %v1218 = vmax.f32 %v1198, 0.0
        %v1219 = vmax.f32 %v1201, 0.0
        %v1220 = vpack.c.bf16 %v1205, %v1204
        %v1221 = vpack.c.bf16 %v1207, %v1206
        %v1222 = vpack.c.bf16 %v1209, %v1208
        %v1223 = vpack.c.bf16 %v1211, %v1210
        %v1224 = vpack.c.bf16 %v1213, %v1212
        %v1225 = vpack.c.bf16 %v1215, %v1214
        %v1226 = vpack.c.bf16 %v1217, %v1216
        %v1227 = vpack.c.bf16 %v1219, %v1218
        %v1228 = vld [vmem:[#allocation13] sm:$0xff]
        %v1229 = vld [vmem:[#allocation13 + $0x8] sm:$0xff]
        %v1230 = vld [vmem:[#allocation13 + $0x10] sm:$0xff]
        %v1231 = vld [vmem:[#allocation13 + $0x18] sm:$0xff]
        %v1232 = vld [vmem:[#allocation13 + $0x20] sm:$0xff]
        %v1233 = vld [vmem:[#allocation13 + $0x28] sm:$0xff]
        %v1234 = vld [vmem:[#allocation13 + $0x30] sm:$0xff]
        %v1235 = vld [vmem:[#allocation13 + $0x38] sm:$0xff]
        %v1236 = vld [vmem:[#allocation13 + $0x40] sm:$0xff]
        %v1237 = vld [vmem:[#allocation13 + $0x48] sm:$0xff]
        %v1238 = vld [vmem:[#allocation13 + $0x50] sm:$0xff]
        %v1239 = vld [vmem:[#allocation13 + $0x58] sm:$0xff]
        %v1240 = vld [vmem:[#allocation13 + $0x60] sm:$0xff]
        %v1241 = vld [vmem:[#allocation13 + $0x68] sm:$0xff]
        %v1242 = vld [vmem:[#allocation13 + $0x70] sm:$0xff]
        %v1243 = vld [vmem:[#allocation13 + $0x78] sm:$0xff]
        %v1244 = vld [vmem:[#allocation14] sm:$0x3]
        %v1246 = vlaneseq
        %v1247 = vshrl.u32 %v1246, 7
        %v1248 = vsub.s32 0, %v1247
        %v1249 = vrot.slane %v1244, %v1248
        %v1250 = vlaneseq
        %v1251 = vshrl.u32 %v1250, 7
        %v1252 = vsub.s32 1, %v1251
        %v1253 = vrot.slane %v1244, %v1252
        %v1272 = vunpack.c.l.b16 %v1228
        %v1273 = vunpack.c.h.b16 %v1228
        %v1274 = vunpack.c.l.b16 %v1229
        %v1275 = vunpack.c.h.b16 %v1229
        %v1276 = vunpack.c.l.b16 %v1230
        %v1277 = vunpack.c.h.b16 %v1230
        %v1278 = vunpack.c.l.b16 %v1231
        %v1279 = vunpack.c.h.b16 %v1231
        %v1280 = vunpack.c.l.b16 %v1232
        %v1281 = vunpack.c.h.b16 %v1232
        %v1282 = vunpack.c.l.b16 %v1233
        %v1283 = vunpack.c.h.b16 %v1233
        %v1284 = vunpack.c.l.b16 %v1234
        %v1285 = vunpack.c.h.b16 %v1234
        %v1286 = vunpack.c.l.b16 %v1235
        %v1287 = vunpack.c.h.b16 %v1235
        %v1288 = vunpack.c.l.b16 %v1236
        %v1289 = vunpack.c.h.b16 %v1236
        %v1290 = vunpack.c.l.b16 %v1237
        %v1291 = vunpack.c.h.b16 %v1237
        %v1292 = vunpack.c.l.b16 %v1238
        %v1293 = vunpack.c.h.b16 %v1238
        %v1294 = vunpack.c.l.b16 %v1239
        %v1295 = vunpack.c.h.b16 %v1239
        %v1296 = vunpack.c.l.b16 %v1240
        %v1297 = vunpack.c.h.b16 %v1240
        %v1298 = vunpack.c.l.b16 %v1241
        %v1299 = vunpack.c.h.b16 %v1241
        %v1300 = vunpack.c.l.b16 %v1242
        %v1301 = vunpack.c.h.b16 %v1242
        %v1302 = vunpack.c.l.b16 %v1243
        %v1303 = vunpack.c.h.b16 %v1243
        %v1304 = vpack.c.b16 %v1274, %v1272
        %v1305 = vpack.c.b16 %v1275, %v1273
        %v1306 = vpack.c.b16 %v1278, %v1276
        %v1307 = vpack.c.b16 %v1279, %v1277
        %v1308 = vpack.c.b16 %v1282, %v1280
        %v1309 = vpack.c.b16 %v1283, %v1281
        %v1310 = vpack.c.b16 %v1286, %v1284
        %v1311 = vpack.c.b16 %v1287, %v1285
        %v1312 = vpack.c.b16 %v1290, %v1288
        %v1313 = vpack.c.b16 %v1291, %v1289
        %v1314 = vpack.c.b16 %v1294, %v1292
        %v1315 = vpack.c.b16 %v1295, %v1293
        %v1316 = vpack.c.b16 %v1298, %v1296
        %v1317 = vpack.c.b16 %v1299, %v1297
        %v1318 = vpack.c.b16 %v1302, %v1300
        %v1319 = vpack.c.b16 %v1303, %v1301
        %1336 = vmatprep.subr.bf16.mxu0 %v1305
        %1337 = vmatpush1.bf16.msra.mxu0 %v1304
        %1338 = vmatprep.subr.bf16.mxu0 %v1307
        %1339 = vmatpush1.bf16.msra.mxu0 %v1306
        %1340 = vmatprep.subr.bf16.mxu0 %v1309
        %1341 = vmatpush1.bf16.msra.mxu0 %v1308
        %1342 = vmatprep.subr.bf16.mxu0 %v1311
        %1343 = vmatpush1.bf16.msra.mxu0 %v1310
        %1344 = vmatprep.subr.bf16.mxu0 %v1313
        %1345 = vmatpush1.bf16.msra.mxu0 %v1312
        %1346 = vmatprep.subr.bf16.mxu0 %v1315
        %1347 = vmatpush1.bf16.msra.mxu0 %v1314
        %1348 = vmatprep.subr.bf16.mxu0 %v1317
        %1349 = vmatpush1.bf16.msra.mxu0 %v1316
        %1350 = vmatprep.subr.bf16.mxu0 %v1319
        %1351 = vmatpush1.bf16.msra.mxu0 %v1318
        %1352 = vmatprep.subr.bf16.mxu0 0
        %1353 = vmatpush1.bf16.msra.mxu0 0
        %1354 = vmatprep.subr.bf16.mxu0 0
        %1355 = vmatpush1.bf16.msra.mxu0 0
        %1356 = vmatprep.subr.bf16.mxu0 0
        %1357 = vmatpush1.bf16.msra.mxu0 0
        %1358 = vmatprep.subr.bf16.mxu0 0
        %1359 = vmatpush1.bf16.msra.mxu0 0
        %1360 = vmatprep.subr.bf16.mxu0 0
        %1361 = vmatpush1.bf16.msra.mxu0 0
        %1362 = vmatprep.subr.bf16.mxu0 0
        %1363 = vmatpush1.bf16.msra.mxu0 0
        %1364 = vmatprep.subr.bf16.mxu0 0
        %1365 = vmatpush1.bf16.msra.mxu0 0
        %1366 = vmatprep.subr.bf16.mxu0 0
        %1367 = vmatpush1.bf16.msra.mxu0 0
        %1368 = vmatprep.mubr.bf16.mxu0 0
        %1369 = vmatmul.mubr.bf16.gmra.mrb[0].mxu0 %v1220
        %v1370 = vpop.f32.mrb[0].mxu0
        %v1371 = vadd.f32 %v1249, %v1370
        %v1372 = vpop.f32.mrb[0].mxu0
        %v1373 = vadd.f32 %v1253, %v1372
        %v1374 = vpop.f32.mrb[0].mxu0
        %v1375 = vadd.f32 %v1249, %v1374
        %v1376 = vpop.f32.mrb[0].mxu0
        %v1377 = vadd.f32 %v1253, %v1376
        %1378 = vmatprep.mubr.bf16.mxu0 0
        %1379 = vmatmul.mubr.bf16.gmra.mrb[0].mxu0 %v1221
        %v1380 = vpop.f32.mrb[0].mxu0
        %v1381 = vadd.f32 %v1249, %v1380
        %v1382 = vpop.f32.mrb[0].mxu0
        %v1383 = vadd.f32 %v1253, %v1382
        %v1384 = vpop.f32.mrb[0].mxu0
        %v1385 = vadd.f32 %v1249, %v1384
        %v1386 = vpop.f32.mrb[0].mxu0
        %v1387 = vadd.f32 %v1253, %v1386
        %1388 = vmatprep.mubr.bf16.mxu0 0
        %1389 = vmatmul.mubr.bf16.gmra.mrb[0].mxu0 %v1222
        %v1390 = vpop.f32.mrb[0].mxu0
        %v1391 = vadd.f32 %v1249, %v1390
        %v1392 = vpop.f32.mrb[0].mxu0
        %v1393 = vadd.f32 %v1253, %v1392
        %v1394 = vpop.f32.mrb[0].mxu0
        %v1395 = vadd.f32 %v1249, %v1394
        %v1396 = vpop.f32.mrb[0].mxu0
        %v1397 = vadd.f32 %v1253, %v1396
        %1398 = vmatprep.mubr.bf16.mxu0 0
        %1399 = vmatmul.mubr.bf16.gmra.mrb[0].mxu0 %v1223
        %v1400 = vpop.f32.mrb[0].mxu0
        %v1401 = vadd.f32 %v1249, %v1400
        %v1402 = vpop.f32.mrb[0].mxu0
        %v1403 = vadd.f32 %v1253, %v1402
        %v1404 = vpop.f32.mrb[0].mxu0
        %v1405 = vadd.f32 %v1249, %v1404
        %v1406 = vpop.f32.mrb[0].mxu0
        %v1407 = vadd.f32 %v1253, %v1406
        %1408 = vmatprep.mubr.bf16.mxu0 0
        %1409 = vmatmul.mubr.bf16.gmra.mrb[0].mxu0 %v1224
        %v1410 = vpop.f32.mrb[0].mxu0
        %v1411 = vadd.f32 %v1249, %v1410
        %v1412 = vpop.f32.mrb[0].mxu0
        %v1413 = vadd.f32 %v1253, %v1412
        %v1414 = vpop.f32.mrb[0].mxu0
        %v1415 = vadd.f32 %v1249, %v1414
        %v1416 = vpop.f32.mrb[0].mxu0
        %v1417 = vadd.f32 %v1253, %v1416
        %1418 = vmatprep.mubr.bf16.mxu0 0
        %1419 = vmatmul.mubr.bf16.gmra.mrb[0].mxu0 %v1225
        %v1420 = vpop.f32.mrb[0].mxu0
        %v1421 = vadd.f32 %v1249, %v1420
        %v1422 = vpop.f32.mrb[0].mxu0
        %v1423 = vadd.f32 %v1253, %v1422
        %v1424 = vpop.f32.mrb[0].mxu0
        %v1425 = vadd.f32 %v1249, %v1424
        %v1426 = vpop.f32.mrb[0].mxu0
        %v1427 = vadd.f32 %v1253, %v1426
        %1428 = vmatprep.mubr.bf16.mxu0 0
        %1429 = vmatmul.mubr.bf16.gmra.mrb[0].mxu0 %v1226
        %v1430 = vpop.f32.mrb[0].mxu0
        %v1431 = vadd.f32 %v1249, %v1430
        %v1432 = vpop.f32.mrb[0].mxu0
        %v1433 = vadd.f32 %v1253, %v1432
        %v1434 = vpop.f32.mrb[0].mxu0
        %v1435 = vadd.f32 %v1249, %v1434
        %v1436 = vpop.f32.mrb[0].mxu0
        %v1437 = vadd.f32 %v1253, %v1436
        %1438 = vmatprep.mubr.bf16.mxu0 0
        %1439 = vmatmul.mubr.bf16.gmra.mrb[0].mxu0 %v1227
        %v1440 = vpop.f32.mrb[0].mxu0
        %v1441 = vadd.f32 %v1249, %v1440
        %v1442 = vpop.f32.mrb[0].mxu0
        %v1443 = vadd.f32 %v1253, %v1442
        %v1444 = vpop.f32.mrb[0].mxu0
        %v1445 = vadd.f32 %v1249, %v1444
        %v1446 = vpop.f32.mrb[0].mxu0
        %v1447 = vadd.f32 %v1253, %v1446
        %1448 = vdwg.mxu0
        %v1449 = vmul.f32 %v1373, 0.5
        %v1450 = vmul.f32 %v1377, 0.5
        %v1451 = vmul.f32 %v1383, 0.5
        %v1452 = vmul.f32 %v1387, 0.5
        %v1453 = vmul.f32 %v1393, 0.5
        %v1454 = vmul.f32 %v1397, 0.5
        %v1455 = vmul.f32 %v1403, 0.5
        %v1456 = vmul.f32 %v1407, 0.5
        %v1457 = vmul.f32 %v1413, 0.5
        %v1458 = vmul.f32 %v1417, 0.5
        %v1459 = vmul.f32 %v1423, 0.5
        %v1460 = vmul.f32 %v1427, 0.5
        %v1461 = vmul.f32 %v1433, 0.5
        %v1462 = vmul.f32 %v1437, 0.5
        %v1463 = vmul.f32 %v1443, 0.5
        %v1464 = vmul.f32 %v1447, 0.5
        %v1465 = vmul.f32 %v1449, 1.442695
        %v1466 = vpow.pop %v1465
        %v1467 = vmul.f32 %v1450, 1.442695
        %v1468 = vpow.pop %v1467
        %v1469 = vmul.f32 %v1451, 1.442695
        %v1470 = vpow.pop %v1469
        %v1471 = vmul.f32 %v1452, 1.442695
        %v1472 = vpow.pop %v1471
        %v1473 = vmul.f32 %v1453, 1.442695
        %v1474 = vpow.pop %v1473
        %v1475 = vmul.f32 %v1454, 1.442695
        %v1476 = vpow.pop %v1475
        %v1477 = vmul.f32 %v1455, 1.442695
        %v1478 = vpow.pop %v1477
        %v1479 = vmul.f32 %v1456, 1.442695
        %v1480 = vpow.pop %v1479
        %v1481 = vmul.f32 %v1457, 1.442695
        %v1482 = vpow.pop %v1481
        %v1483 = vmul.f32 %v1458, 1.442695
        %v1484 = vpow.pop %v1483
        %v1485 = vmul.f32 %v1459, 1.442695
        %v1486 = vpow.pop %v1485
        %v1487 = vmul.f32 %v1460, 1.442695
        %v1488 = vpow.pop %v1487
        %v1489 = vmul.f32 %v1461, 1.442695
        %v1490 = vpow.pop %v1489
        %v1491 = vmul.f32 %v1462, 1.442695
        %v1492 = vpow.pop %v1491
        %v1493 = vmul.f32 %v1463, 1.442695
        %v1494 = vpow.pop %v1493
        %v1495 = vmul.f32 %v1464, 1.442695
        %v1496 = vpow.pop %v1495
        %v1497 = vld [vmem:[%s622] sm:$0xff]
        %v1498 = vld [vmem:[%s622 + $0x8] sm:$0xff]
        %v1499 = vld [vmem:[%s622 + $0x10] sm:$0xff]
        %v1500 = vld [vmem:[%s622 + $0x18] sm:$0xff]
        %v1501 = vld [vmem:[%s622 + $0x20] sm:$0xff]
        %v1502 = vld [vmem:[%s622 + $0x28] sm:$0xff]
        %v1503 = vld [vmem:[%s622 + $0x30] sm:$0xff]
        %v1504 = vld [vmem:[%s622 + $0x38] sm:$0xff]
        %v1505 = vld [vmem:[%s622 + $0x40] sm:$0xff]
        %v1506 = vld [vmem:[%s622 + $0x48] sm:$0xff]
        %v1507 = vld [vmem:[%s622 + $0x50] sm:$0xff]
        %v1508 = vld [vmem:[%s622 + $0x58] sm:$0xff]
        %v1509 = vld [vmem:[%s622 + $0x60] sm:$0xff]
        %v1510 = vld [vmem:[%s622 + $0x68] sm:$0xff]
        %v1511 = vld [vmem:[%s622 + $0x70] sm:$0xff]
        %v1512 = vld [vmem:[%s622 + $0x78] sm:$0xff]
        %v1513 = vmul.f32 %v1466, %v1497
        %v1514 = vmul.f32 %v1468, %v1498
        %v1515 = vmul.f32 %v1470, %v1499
        %v1516 = vmul.f32 %v1472, %v1500
        %v1517 = vmul.f32 %v1474, %v1501
        %v1518 = vmul.f32 %v1476, %v1502
        %v1519 = vmul.f32 %v1478, %v1503
        %v1520 = vmul.f32 %v1480, %v1504
        %v1521 = vmul.f32 %v1482, %v1505
        %v1522 = vmul.f32 %v1484, %v1506
        %v1523 = vmul.f32 %v1486, %v1507
        %v1524 = vmul.f32 %v1488, %v1508
        %v1525 = vmul.f32 %v1490, %v1509
        %v1526 = vmul.f32 %v1492, %v1510
        %v1527 = vmul.f32 %v1494, %v1511
        %v1528 = vmul.f32 %v1496, %v1512
        %v1529 = vadd.f32 %v1371, %v1513
        %v1530 = vadd.f32 %v1375, %v1514
        %v1531 = vadd.f32 %v1381, %v1515
        %v1532 = vadd.f32 %v1385, %v1516
        %v1533 = vadd.f32 %v1391, %v1517
        %v1534 = vadd.f32 %v1395, %v1518
        %v1535 = vadd.f32 %v1401, %v1519
        %v1536 = vadd.f32 %v1405, %v1520
        %v1537 = vadd.f32 %v1411, %v1521
        %v1538 = vadd.f32 %v1415, %v1522
        %v1539 = vadd.f32 %v1421, %v1523
        %v1540 = vadd.f32 %v1425, %v1524
        %v1541 = vadd.f32 %v1431, %v1525
        %v1542 = vadd.f32 %v1435, %v1526
        %v1543 = vadd.f32 %v1441, %v1527
        %v1544 = vadd.f32 %v1445, %v1528
        %1545 = vst [vmem:[%s719] sm:$0xff] %v1371
        %1546 = vst [vmem:[%s719 + $0x18] sm:$0xff] %v1375
        %1547 = vst [vmem:[%s719 + $0x30] sm:$0xff] %v1381
        %1548 = vst [vmem:[%s719 + $0x48] sm:$0xff] %v1385
        %1549 = vst [vmem:[%s719 + $0x60] sm:$0xff] %v1391
        %1550 = vst [vmem:[%s719 + $0x78] sm:$0xff] %v1395
        %1551 = vst [vmem:[%s719 + $0x90] sm:$0xff] %v1401
        %1552 = vst [vmem:[%s719 + $0xa8] sm:$0xff] %v1405
        %1553 = vst [vmem:[%s719 + $0xc0] sm:$0xff] %v1411
        %1554 = vst [vmem:[%s719 + $0xd8] sm:$0xff] %v1415
        %1555 = vst [vmem:[%s719 + $0xf0] sm:$0xff] %v1421
        %1556 = vst [vmem:[%s719 + $0x108] sm:$0xff] %v1425
        %1557 = vst [vmem:[%s719 + $0x120] sm:$0xff] %v1431
        %1558 = vst [vmem:[%s719 + $0x138] sm:$0xff] %v1435
        %1559 = vst [vmem:[%s719 + $0x150] sm:$0xff] %v1441
        %1560 = vst [vmem:[%s719 + $0x168] sm:$0xff] %v1445
        %1561 = vst [vmem:[%s719 + $0x8] sm:$0xff] %v1373
        %1562 = vst [vmem:[%s719 + $0x20] sm:$0xff] %v1377
        %1563 = vst [vmem:[%s719 + $0x38] sm:$0xff] %v1383
        %1564 = vst [vmem:[%s719 + $0x50] sm:$0xff] %v1387
        %1565 = vst [vmem:[%s719 + $0x68] sm:$0xff] %v1393
        %1566 = vst [vmem:[%s719 + $0x80] sm:$0xff] %v1397
        %1567 = vst [vmem:[%s719 + $0x98] sm:$0xff] %v1403
        %1568 = vst [vmem:[%s719 + $0xb0] sm:$0xff] %v1407
        %1569 = vst [vmem:[%s719 + $0xc8] sm:$0xff] %v1413
        %1570 = vst [vmem:[%s719 + $0xe0] sm:$0xff] %v1417
        %1571 = vst [vmem:[%s719 + $0xf8] sm:$0xff] %v1423
        %1572 = vst [vmem:[%s719 + $0x110] sm:$0xff] %v1427
        %1573 = vst [vmem:[%s719 + $0x128] sm:$0xff] %v1433
        %1574 = vst [vmem:[%s719 + $0x140] sm:$0xff] %v1437
        %1575 = vst [vmem:[%s719 + $0x158] sm:$0xff] %v1443
        %1576 = vst [vmem:[%s719 + $0x170] sm:$0xff] %v1447
        %1577 = vst [vmem:[%s719 + $0x10] sm:$0xff] %v1529
        %1578 = vst [vmem:[%s719 + $0x28] sm:$0xff] %v1530
        %1579 = vst [vmem:[%s719 + $0x40] sm:$0xff] %v1531
        %1580 = vst [vmem:[%s719 + $0x58] sm:$0xff] %v1532
        %1581 = vst [vmem:[%s719 + $0x70] sm:$0xff] %v1533
        %1582 = vst [vmem:[%s719 + $0x88] sm:$0xff] %v1534
        %1583 = vst [vmem:[%s719 + $0xa0] sm:$0xff] %v1535
        %1584 = vst [vmem:[%s719 + $0xb8] sm:$0xff] %v1536
        %1585 = vst [vmem:[%s719 + $0xd0] sm:$0xff] %v1537
        %1586 = vst [vmem:[%s719 + $0xe8] sm:$0xff] %v1538
        %1587 = vst [vmem:[%s719 + $0x100] sm:$0xff] %v1539
        %1588 = vst [vmem:[%s719 + $0x118] sm:$0xff] %v1540
        %1589 = vst [vmem:[%s719 + $0x130] sm:$0xff] %v1541
        %1590 = vst [vmem:[%s719 + $0x148] sm:$0xff] %v1542
        %1591 = vst [vmem:[%s719 + $0x160] sm:$0xff] %v1543
        %1592 = vst [vmem:[%s719 + $0x178] sm:$0xff] %v1544
        %v1593 = vpack.c.bf16 %v1530, %v1529
        %v1594 = vpack.c.bf16 %v1532, %v1531
        %v1595 = vpack.c.bf16 %v1534, %v1533
        %v1596 = vpack.c.bf16 %v1536, %v1535
        %v1597 = vpack.c.bf16 %v1538, %v1537
        %v1598 = vpack.c.bf16 %v1540, %v1539
        %v1599 = vpack.c.bf16 %v1542, %v1541
        %v1600 = vpack.c.bf16 %v1544, %v1543
        %v1601 = vld [vmem:[#allocation16] sm:$0xf]
        %v1602 = vld [vmem:[#allocation16 + $0x4] sm:$0xf]
        %v1603 = vld [vmem:[#allocation16 + $0x8] sm:$0xf]
        %v1604 = vld [vmem:[#allocation16 + $0xc] sm:$0xf]
        %v1605 = vld [vmem:[#allocation16 + $0x10] sm:$0xf]
        %v1606 = vld [vmem:[#allocation16 + $0x14] sm:$0xf]
        %v1607 = vld [vmem:[#allocation16 + $0x18] sm:$0xf]
        %v1608 = vld [vmem:[#allocation16 + $0x1c] sm:$0xf]
        %v1609 = vld [vmem:[#allocation16 + $0x20] sm:$0xf]
        %v1610 = vld [vmem:[#allocation16 + $0x24] sm:$0xf]
        %v1611 = vld [vmem:[#allocation16 + $0x28] sm:$0xf]
        %v1612 = vld [vmem:[#allocation16 + $0x2c] sm:$0xf]
        %v1613 = vld [vmem:[#allocation16 + $0x30] sm:$0xf]
        %v1614 = vld [vmem:[#allocation16 + $0x34] sm:$0xf]
        %v1615 = vld [vmem:[#allocation16 + $0x38] sm:$0xf]
        %v1616 = vld [vmem:[#allocation16 + $0x3c] sm:$0xf]
        %v1617 = vld [vmem:[#allocation17] sm:$0x1]
        %v1619 = vlaneseq
        %v1620 = vshrl.u32 %v1619, 7
        %v1621 = vsub.s32 0, %v1620
        %v1622 = vrot.slane %v1617, %v1621
        %v1640 = vunpack.c.l.b16 %v1601
        %v1641 = vunpack.c.l.b16 %v1602
        %v1642 = vunpack.c.l.b16 %v1603
        %v1643 = vunpack.c.l.b16 %v1604
        %v1644 = vunpack.c.l.b16 %v1605
        %v1645 = vunpack.c.l.b16 %v1606
        %v1646 = vunpack.c.l.b16 %v1607
        %v1647 = vunpack.c.l.b16 %v1608
        %v1648 = vunpack.c.l.b16 %v1609
        %v1649 = vunpack.c.l.b16 %v1610
        %v1650 = vunpack.c.l.b16 %v1611
        %v1651 = vunpack.c.l.b16 %v1612
        %v1652 = vunpack.c.l.b16 %v1613
        %v1653 = vunpack.c.l.b16 %v1614
        %v1654 = vunpack.c.l.b16 %v1615
        %v1655 = vunpack.c.l.b16 %v1616
        %v1656 = vpack.c.b16 %v1641, %v1640
        %v1657 = vpack.c.b16 %v1643, %v1642
        %v1658 = vpack.c.b16 %v1645, %v1644
        %v1659 = vpack.c.b16 %v1647, %v1646
        %v1660 = vpack.c.b16 %v1649, %v1648
        %v1661 = vpack.c.b16 %v1651, %v1650
        %v1662 = vpack.c.b16 %v1653, %v1652
        %v1663 = vpack.c.b16 %v1655, %v1654
        %1672 = vmatprep.subr.bf16.mxu0 0
        %1673 = vmatpush1.bf16.msra.mxu0 %v1656
        %1674 = vmatprep.subr.bf16.mxu0 0
        %1675 = vmatpush1.bf16.msra.mxu0 %v1657
        %1676 = vmatprep.subr.bf16.mxu0 0
        %1677 = vmatpush1.bf16.msra.mxu0 %v1658
        %1678 = vmatprep.subr.bf16.mxu0 0
        %1679 = vmatpush1.bf16.msra.mxu0 %v1659
        %1680 = vmatprep.subr.bf16.mxu0 0
        %1681 = vmatpush1.bf16.msra.mxu0 %v1660
        %1682 = vmatprep.subr.bf16.mxu0 0
        %1683 = vmatpush1.bf16.msra.mxu0 %v1661
        %1684 = vmatprep.subr.bf16.mxu0 0
        %1685 = vmatpush1.bf16.msra.mxu0 %v1662
        %1686 = vmatprep.subr.bf16.mxu0 0
        %1687 = vmatpush1.bf16.msra.mxu0 %v1663
        %1688 = vmatprep.subr.bf16.mxu0 0
        %1689 = vmatpush1.bf16.msra.mxu0 0
        %1690 = vmatprep.subr.bf16.mxu0 0
        %1691 = vmatpush1.bf16.msra.mxu0 0
        %1692 = vmatprep.subr.bf16.mxu0 0
        %1693 = vmatpush1.bf16.msra.mxu0 0
        %1694 = vmatprep.subr.bf16.mxu0 0
        %1695 = vmatpush1.bf16.msra.mxu0 0
        %1696 = vmatprep.subr.bf16.mxu0 0
        %1697 = vmatpush1.bf16.msra.mxu0 0
        %1698 = vmatprep.subr.bf16.mxu0 0
        %1699 = vmatpush1.bf16.msra.mxu0 0
        %1700 = vmatprep.subr.bf16.mxu0 0
        %1701 = vmatpush1.bf16.msra.mxu0 0
        %1702 = vmatprep.subr.bf16.mxu0 0
        %1703 = vmatpush1.bf16.msra.mxu0 0
        %1704 = vmatprep.mubr.bf16.mxu0 0
        %1705 = vmatmul.mubr.bf16.gmra.mrb[0].mxu0 %v1593
        %v1706 = vpop.f32.mrb[0].mxu0
        %v1707 = vadd.f32 %v1622, %v1706
        %v1708 = vpop.f32.mrb[0].mxu0
        %v1709 = vpop.f32.mrb[0].mxu0
        %v1710 = vadd.f32 %v1622, %v1709
        %v1711 = vpop.f32.mrb[0].mxu0
        %1712 = vmatprep.mubr.bf16.mxu0 0
        %1713 = vmatmul.mubr.bf16.gmra.mrb[0].mxu0 %v1594
        %v1714 = vpop.f32.mrb[0].mxu0
        %v1715 = vadd.f32 %v1622, %v1714
        %v1716 = vpop.f32.mrb[0].mxu0
        %v1717 = vpop.f32.mrb[0].mxu0
        %v1718 = vadd.f32 %v1622, %v1717
        %v1719 = vpop.f32.mrb[0].mxu0
        %1720 = vmatprep.mubr.bf16.mxu0 0
        %1721 = vmatmul.mubr.bf16.gmra.mrb[0].mxu0 %v1595
        %v1722 = vpop.f32.mrb[0].mxu0
        %v1723 = vadd.f32 %v1622, %v1722
        %v1724 = vpop.f32.mrb[0].mxu0
        %v1725 = vpop.f32.mrb[0].mxu0
        %v1726 = vadd.f32 %v1622, %v1725
        %v1727 = vpop.f32.mrb[0].mxu0
        %1728 = vmatprep.mubr.bf16.mxu0 0
        %1729 = vmatmul.mubr.bf16.gmra.mrb[0].mxu0 %v1596
        %v1730 = vpop.f32.mrb[0].mxu0
        %v1731 = vadd.f32 %v1622, %v1730
        %v1732 = vpop.f32.mrb[0].mxu0
        %v1733 = vpop.f32.mrb[0].mxu0
        %v1734 = vadd.f32 %v1622, %v1733
        %v1735 = vpop.f32.mrb[0].mxu0
        %1736 = vmatprep.mubr.bf16.mxu0 0
        %1737 = vmatmul.mubr.bf16.gmra.mrb[0].mxu0 %v1597
        %v1738 = vpop.f32.mrb[0].mxu0
        %v1739 = vadd.f32 %v1622, %v1738
        %v1740 = vpop.f32.mrb[0].mxu0
        %v1741 = vpop.f32.mrb[0].mxu0
        %v1742 = vadd.f32 %v1622, %v1741
        %v1743 = vpop.f32.mrb[0].mxu0
        %1744 = vmatprep.mubr.bf16.mxu0 0
        %1745 = vmatmul.mubr.bf16.gmra.mrb[0].mxu0 %v1598
        %v1746 = vpop.f32.mrb[0].mxu0
        %v1747 = vadd.f32 %v1622, %v1746
        %v1748 = vpop.f32.mrb[0].mxu0
        %v1749 = vpop.f32.mrb[0].mxu0
        %v1750 = vadd.f32 %v1622, %v1749
        %v1751 = vpop.f32.mrb[0].mxu0
        %1752 = vmatprep.mubr.bf16.mxu0 0
        %1753 = vmatmul.mubr.bf16.gmra.mrb[0].mxu0 %v1599
        %v1754 = vpop.f32.mrb[0].mxu0
        %v1755 = vadd.f32 %v1622, %v1754
        %v1756 = vpop.f32.mrb[0].mxu0
        %v1757 = vpop.f32.mrb[0].mxu0
        %v1758 = vadd.f32 %v1622, %v1757
        %v1759 = vpop.f32.mrb[0].mxu0
        %1760 = vmatprep.mubr.bf16.mxu0 0
        %1761 = vmatmul.mubr.bf16.gmra.mrb[0].mxu0 %v1600
        %v1762 = vpop.f32.mrb[0].mxu0
        %v1763 = vadd.f32 %v1622, %v1762
        %v1764 = vpop.f32.mrb[0].mxu0
        %v1765 = vpop.f32.mrb[0].mxu0
        %v1766 = vadd.f32 %v1622, %v1765
        %v1767 = vpop.f32.mrb[0].mxu0
        %1768 = vdwg.mxu0
        %v1769 = vmax.f32 %v1707, 0.0
        %v1770 = vmax.f32 %v1710, 0.0
        %v1771 = vmax.f32 %v1715, 0.0
        %v1772 = vmax.f32 %v1718, 0.0
        %v1773 = vmax.f32 %v1723, 0.0
        %v1774 = vmax.f32 %v1726, 0.0
        %v1775 = vmax.f32 %v1731, 0.0
        %v1776 = vmax.f32 %v1734, 0.0
        %v1777 = vmax.f32 %v1739, 0.0
        %v1778 = vmax.f32 %v1742, 0.0
        %v1779 = vmax.f32 %v1747, 0.0
        %v1780 = vmax.f32 %v1750, 0.0
        %v1781 = vmax.f32 %v1755, 0.0
        %v1782 = vmax.f32 %v1758, 0.0
        %v1783 = vmax.f32 %v1763, 0.0
        %v1784 = vmax.f32 %v1766, 0.0
        %v1785 = vpack.c.bf16 %v1770, %v1769
        %v1786 = vpack.c.bf16 %v1772, %v1771
        %v1787 = vpack.c.bf16 %v1774, %v1773
        %v1788 = vpack.c.bf16 %v1776, %v1775
        %v1789 = vpack.c.bf16 %v1778, %v1777
        %v1790 = vpack.c.bf16 %v1780, %v1779
        %v1791 = vpack.c.bf16 %v1782, %v1781
        %v1792 = vpack.c.bf16 %v1784, %v1783
        %v1793 = vld [vmem:[#allocation19] sm:$0xf]
        %v1794 = vld [vmem:[#allocation19 + $0x4] sm:$0xf]
        %v1795 = vld [vmem:[#allocation19 + $0x8] sm:$0xf]
        %v1796 = vld [vmem:[#allocation19 + $0xc] sm:$0xf]
        %v1797 = vld [vmem:[#allocation19 + $0x10] sm:$0xf]
        %v1798 = vld [vmem:[#allocation19 + $0x14] sm:$0xf]
        %v1799 = vld [vmem:[#allocation19 + $0x18] sm:$0xf]
        %v1800 = vld [vmem:[#allocation19 + $0x1c] sm:$0xf]
        %v1801 = vld [vmem:[#allocation19 + $0x20] sm:$0xf]
        %v1802 = vld [vmem:[#allocation19 + $0x24] sm:$0xf]
        %v1803 = vld [vmem:[#allocation19 + $0x28] sm:$0xf]
        %v1804 = vld [vmem:[#allocation19 + $0x2c] sm:$0xf]
        %v1805 = vld [vmem:[#allocation19 + $0x30] sm:$0xf]
        %v1806 = vld [vmem:[#allocation19 + $0x34] sm:$0xf]
        %v1807 = vld [vmem:[#allocation19 + $0x38] sm:$0xf]
        %v1808 = vld [vmem:[#allocation19 + $0x3c] sm:$0xf]
        %v1809 = vld [vmem:[#allocation20] sm:$0x1]
        %v1811 = vlaneseq
        %v1812 = vshrl.u32 %v1811, 7
        %v1813 = vsub.s32 0, %v1812
        %v1814 = vrot.slane %v1809, %v1813
        %v1832 = vunpack.c.l.b16 %v1793
        %v1833 = vunpack.c.l.b16 %v1794
        %v1834 = vunpack.c.l.b16 %v1795
        %v1835 = vunpack.c.l.b16 %v1796
        %v1836 = vunpack.c.l.b16 %v1797
        %v1837 = vunpack.c.l.b16 %v1798
        %v1838 = vunpack.c.l.b16 %v1799
        %v1839 = vunpack.c.l.b16 %v1800
        %v1840 = vunpack.c.l.b16 %v1801
        %v1841 = vunpack.c.l.b16 %v1802
        %v1842 = vunpack.c.l.b16 %v1803
        %v1843 = vunpack.c.l.b16 %v1804
        %v1844 = vunpack.c.l.b16 %v1805
        %v1845 = vunpack.c.l.b16 %v1806
        %v1846 = vunpack.c.l.b16 %v1807
        %v1847 = vunpack.c.l.b16 %v1808
        %v1848 = vpack.c.b16 %v1833, %v1832
        %v1849 = vpack.c.b16 %v1835, %v1834
        %v1850 = vpack.c.b16 %v1837, %v1836
        %v1851 = vpack.c.b16 %v1839, %v1838
        %v1852 = vpack.c.b16 %v1841, %v1840
        %v1853 = vpack.c.b16 %v1843, %v1842
        %v1854 = vpack.c.b16 %v1845, %v1844
        %v1855 = vpack.c.b16 %v1847, %v1846
        %1864 = vmatprep.subr.bf16.mxu0 0
        %1865 = vmatpush1.bf16.msra.mxu0 %v1848
        %1866 = vmatprep.subr.bf16.mxu0 0
        %1867 = vmatpush1.bf16.msra.mxu0 %v1849
        %1868 = vmatprep.subr.bf16.mxu0 0
        %1869 = vmatpush1.bf16.msra.mxu0 %v1850
        %1870 = vmatprep.subr.bf16.mxu0 0
        %1871 = vmatpush1.bf16.msra.mxu0 %v1851
        %1872 = vmatprep.subr.bf16.mxu0 0
        %1873 = vmatpush1.bf16.msra.mxu0 %v1852
        %1874 = vmatprep.subr.bf16.mxu0 0
        %1875 = vmatpush1.bf16.msra.mxu0 %v1853
        %1876 = vmatprep.subr.bf16.mxu0 0
        %1877 = vmatpush1.bf16.msra.mxu0 %v1854
        %1878 = vmatprep.subr.bf16.mxu0 0
        %1879 = vmatpush1.bf16.msra.mxu0 %v1855
        %1880 = vmatprep.subr.bf16.mxu0 0
        %1881 = vmatpush1.bf16.msra.mxu0 0
        %1882 = vmatprep.subr.bf16.mxu0 0
        %1883 = vmatpush1.bf16.msra.mxu0 0
        %1884 = vmatprep.subr.bf16.mxu0 0
        %1885 = vmatpush1.bf16.msra.mxu0 0
        %1886 = vmatprep.subr.bf16.mxu0 0
        %1887 = vmatpush1.bf16.msra.mxu0 0
        %1888 = vmatprep.subr.bf16.mxu0 0
        %1889 = vmatpush1.bf16.msra.mxu0 0
        %1890 = vmatprep.subr.bf16.mxu0 0
        %1891 = vmatpush1.bf16.msra.mxu0 0
        %1892 = vmatprep.subr.bf16.mxu0 0
        %1893 = vmatpush1.bf16.msra.mxu0 0
        %1894 = vmatprep.subr.bf16.mxu0 0
        %1895 = vmatpush1.bf16.msra.mxu0 0
        %1896 = vmatprep.mubr.bf16.mxu0 0
        %1897 = vmatmul.mubr.bf16.gmra.mrb[0].mxu0 %v1785
        %v1898 = vpop.f32.mrb[0].mxu0
        %v1899 = vadd.f32 %v1814, %v1898
        %v1900 = vpop.f32.mrb[0].mxu0
        %v1901 = vpop.f32.mrb[0].mxu0
        %v1902 = vadd.f32 %v1814, %v1901
        %v1903 = vpop.f32.mrb[0].mxu0
        %1904 = vmatprep.mubr.bf16.mxu0 0
        %1905 = vmatmul.mubr.bf16.gmra.mrb[0].mxu0 %v1786
        %v1906 = vpop.f32.mrb[0].mxu0
        %v1907 = vadd.f32 %v1814, %v1906
        %v1908 = vpop.f32.mrb[0].mxu0
        %v1909 = vpop.f32.mrb[0].mxu0
        %v1910 = vadd.f32 %v1814, %v1909
        %v1911 = vpop.f32.mrb[0].mxu0
        %1912 = vmatprep.mubr.bf16.mxu0 0
        %1913 = vmatmul.mubr.bf16.gmra.mrb[0].mxu0 %v1787
        %v1914 = vpop.f32.mrb[0].mxu0
        %v1915 = vadd.f32 %v1814, %v1914
        %v1916 = vpop.f32.mrb[0].mxu0
        %v1917 = vpop.f32.mrb[0].mxu0
        %v1918 = vadd.f32 %v1814, %v1917
        %v1919 = vpop.f32.mrb[0].mxu0
        %1920 = vmatprep.mubr.bf16.mxu0 0
        %1921 = vmatmul.mubr.bf16.gmra.mrb[0].mxu0 %v1788
        %v1922 = vpop.f32.mrb[0].mxu0
        %v1923 = vadd.f32 %v1814, %v1922
        %v1924 = vpop.f32.mrb[0].mxu0
        %v1925 = vpop.f32.mrb[0].mxu0
        %v1926 = vadd.f32 %v1814, %v1925
        %v1927 = vpop.f32.mrb[0].mxu0
        %1928 = vmatprep.mubr.bf16.mxu0 0
        %1929 = vmatmul.mubr.bf16.gmra.mrb[0].mxu0 %v1789
        %v1930 = vpop.f32.mrb[0].mxu0
        %v1931 = vadd.f32 %v1814, %v1930
        %v1932 = vpop.f32.mrb[0].mxu0
        %v1933 = vpop.f32.mrb[0].mxu0
        %v1934 = vadd.f32 %v1814, %v1933
        %v1935 = vpop.f32.mrb[0].mxu0
        %1936 = vmatprep.mubr.bf16.mxu0 0
        %1937 = vmatmul.mubr.bf16.gmra.mrb[0].mxu0 %v1790
        %v1938 = vpop.f32.mrb[0].mxu0
        %v1939 = vadd.f32 %v1814, %v1938
        %v1940 = vpop.f32.mrb[0].mxu0
        %v1941 = vpop.f32.mrb[0].mxu0
        %v1942 = vadd.f32 %v1814, %v1941
        %v1943 = vpop.f32.mrb[0].mxu0
        %1944 = vmatprep.mubr.bf16.mxu0 0
        %1945 = vmatmul.mubr.bf16.gmra.mrb[0].mxu0 %v1791
        %v1946 = vpop.f32.mrb[0].mxu0
        %v1947 = vadd.f32 %v1814, %v1946
        %v1948 = vpop.f32.mrb[0].mxu0
        %v1949 = vpop.f32.mrb[0].mxu0
        %v1950 = vadd.f32 %v1814, %v1949
        %v1951 = vpop.f32.mrb[0].mxu0
        %1952 = vmatprep.mubr.bf16.mxu0 0
        %1953 = vmatmul.mubr.bf16.gmra.mrb[0].mxu0 %v1792
        %v1954 = vpop.f32.mrb[0].mxu0
        %v1955 = vadd.f32 %v1814, %v1954
        %v1956 = vpop.f32.mrb[0].mxu0
        %v1957 = vpop.f32.mrb[0].mxu0
        %v1958 = vadd.f32 %v1814, %v1957
        %v1959 = vpop.f32.mrb[0].mxu0
        %1960 = vdwg.mxu0
        %v1961 = vmax.f32 %v1899, 0.0
        %v1962 = vmax.f32 %v1902, 0.0
        %v1963 = vmax.f32 %v1907, 0.0
        %v1964 = vmax.f32 %v1910, 0.0
        %v1965 = vmax.f32 %v1915, 0.0
        %v1966 = vmax.f32 %v1918, 0.0
        %v1967 = vmax.f32 %v1923, 0.0
        %v1968 = vmax.f32 %v1926, 0.0
        %v1969 = vmax.f32 %v1931, 0.0
        %v1970 = vmax.f32 %v1934, 0.0
        %v1971 = vmax.f32 %v1939, 0.0
        %v1972 = vmax.f32 %v1942, 0.0
        %v1973 = vmax.f32 %v1947, 0.0
        %v1974 = vmax.f32 %v1950, 0.0
        %v1975 = vmax.f32 %v1955, 0.0
        %v1976 = vmax.f32 %v1958, 0.0
        %v1977 = vpack.c.bf16 %v1962, %v1961
        %v1978 = vpack.c.bf16 %v1964, %v1963
        %v1979 = vpack.c.bf16 %v1966, %v1965
        %v1980 = vpack.c.bf16 %v1968, %v1967
        %v1981 = vpack.c.bf16 %v1970, %v1969
        %v1982 = vpack.c.bf16 %v1972, %v1971
        %v1983 = vpack.c.bf16 %v1974, %v1973
        %v1984 = vpack.c.bf16 %v1976, %v1975
        %v1985 = vld [vmem:[#allocation22] sm:$0xff]
        %v1986 = vld [vmem:[#allocation22 + $0x8] sm:$0xff]
        %v1987 = vld [vmem:[#allocation22 + $0x10] sm:$0xff]
        %v1988 = vld [vmem:[#allocation22 + $0x18] sm:$0xff]
        %v1989 = vld [vmem:[#allocation22 + $0x20] sm:$0xff]
        %v1990 = vld [vmem:[#allocation22 + $0x28] sm:$0xff]
        %v1991 = vld [vmem:[#allocation22 + $0x30] sm:$0xff]
        %v1992 = vld [vmem:[#allocation22 + $0x38] sm:$0xff]
        %v1993 = vld [vmem:[#allocation22 + $0x40] sm:$0xff]
        %v1994 = vld [vmem:[#allocation22 + $0x48] sm:$0xff]
        %v1995 = vld [vmem:[#allocation22 + $0x50] sm:$0xff]
        %v1996 = vld [vmem:[#allocation22 + $0x58] sm:$0xff]
        %v1997 = vld [vmem:[#allocation22 + $0x60] sm:$0xff]
        %v1998 = vld [vmem:[#allocation22 + $0x68] sm:$0xff]
        %v1999 = vld [vmem:[#allocation22 + $0x70] sm:$0xff]
        %v2000 = vld [vmem:[#allocation22 + $0x78] sm:$0xff]
        %v2001 = vld [vmem:[#allocation22 + $0x80] sm:$0xff]
        %v2002 = vld [vmem:[#allocation22 + $0x88] sm:$0xff]
        %v2003 = vld [vmem:[#allocation22 + $0x90] sm:$0xff]
        %v2004 = vld [vmem:[#allocation22 + $0x98] sm:$0xff]
        %v2005 = vld [vmem:[#allocation22 + $0xa0] sm:$0xff]
        %v2006 = vld [vmem:[#allocation22 + $0xa8] sm:$0xff]
        %v2007 = vld [vmem:[#allocation22 + $0xb0] sm:$0xff]
        %v2008 = vld [vmem:[#allocation22 + $0xb8] sm:$0xff]
        %v2009 = vld [vmem:[#allocation22 + $0xc0] sm:$0xff]
        %v2010 = vld [vmem:[#allocation22 + $0xc8] sm:$0xff]
        %v2011 = vld [vmem:[#allocation22 + $0xd0] sm:$0xff]
        %v2012 = vld [vmem:[#allocation22 + $0xd8] sm:$0xff]
        %v2013 = vld [vmem:[#allocation22 + $0xe0] sm:$0xff]
        %v2014 = vld [vmem:[#allocation22 + $0xe8] sm:$0xff]
        %v2015 = vld [vmem:[#allocation22 + $0xf0] sm:$0xff]
        %v2016 = vld [vmem:[#allocation22 + $0xf8] sm:$0xff]
        %v2017 = vld [vmem:[#allocation23] sm:$0xf]
        %v2019 = vlaneseq
        %v2020 = vshrl.u32 %v2019, 7
        %v2021 = vsub.s32 0, %v2020
        %v2022 = vrot.slane %v2017, %v2021
        %v2023 = vlaneseq
        %v2024 = vshrl.u32 %v2023, 7
        %v2025 = vsub.s32 1, %v2024
        %v2026 = vrot.slane %v2017, %v2025
        %v2027 = vlaneseq
        %v2028 = vshrl.u32 %v2027, 7
        %v2029 = vsub.s32 2, %v2028
        %v2030 = vrot.slane %v2017, %v2029
        %v2031 = vlaneseq
        %v2032 = vshrl.u32 %v2031, 7
        %v2033 = vsub.s32 3, %v2032
        %v2034 = vrot.slane %v2017, %v2033
        %v2071 = vunpack.c.l.b16 %v1985
        %v2072 = vunpack.c.h.b16 %v1985
        %v2073 = vunpack.c.l.b16 %v1986
        %v2074 = vunpack.c.h.b16 %v1986
        %v2075 = vunpack.c.l.b16 %v1987
        %v2076 = vunpack.c.h.b16 %v1987
        %v2077 = vunpack.c.l.b16 %v1988
        %v2078 = vunpack.c.h.b16 %v1988
        %v2079 = vunpack.c.l.b16 %v1989
        %v2080 = vunpack.c.h.b16 %v1989
        %v2081 = vunpack.c.l.b16 %v1990
        %v2082 = vunpack.c.h.b16 %v1990
        %v2083 = vunpack.c.l.b16 %v1991
        %v2084 = vunpack.c.h.b16 %v1991
        %v2085 = vunpack.c.l.b16 %v1992
        %v2086 = vunpack.c.h.b16 %v1992
        %v2087 = vunpack.c.l.b16 %v1993
        %v2088 = vunpack.c.h.b16 %v1993
        %v2089 = vunpack.c.l.b16 %v1994
        %v2090 = vunpack.c.h.b16 %v1994
        %v2091 = vunpack.c.l.b16 %v1995
        %v2092 = vunpack.c.h.b16 %v1995
        %v2093 = vunpack.c.l.b16 %v1996
        %v2094 = vunpack.c.h.b16 %v1996
        %v2095 = vunpack.c.l.b16 %v1997
        %v2096 = vunpack.c.h.b16 %v1997
        %v2097 = vunpack.c.l.b16 %v1998
        %v2098 = vunpack.c.h.b16 %v1998
        %v2099 = vunpack.c.l.b16 %v1999
        %v2100 = vunpack.c.h.b16 %v1999
        %v2101 = vunpack.c.l.b16 %v2000
        %v2102 = vunpack.c.h.b16 %v2000
        %v2103 = vunpack.c.l.b16 %v2001
        %v2104 = vunpack.c.h.b16 %v2001
        %v2105 = vunpack.c.l.b16 %v2002
        %v2106 = vunpack.c.h.b16 %v2002
        %v2107 = vunpack.c.l.b16 %v2003
        %v2108 = vunpack.c.h.b16 %v2003
        %v2109 = vunpack.c.l.b16 %v2004
        %v2110 = vunpack.c.h.b16 %v2004
        %v2111 = vunpack.c.l.b16 %v2005
        %v2112 = vunpack.c.h.b16 %v2005
        %v2113 = vunpack.c.l.b16 %v2006
        %v2114 = vunpack.c.h.b16 %v2006
        %v2115 = vunpack.c.l.b16 %v2007
        %v2116 = vunpack.c.h.b16 %v2007
        %v2117 = vunpack.c.l.b16 %v2008
        %v2118 = vunpack.c.h.b16 %v2008
        %v2119 = vunpack.c.l.b16 %v2009
        %v2120 = vunpack.c.h.b16 %v2009
        %v2121 = vunpack.c.l.b16 %v2010
        %v2122 = vunpack.c.h.b16 %v2010
        %v2123 = vunpack.c.l.b16 %v2011
        %v2124 = vunpack.c.h.b16 %v2011
        %v2125 = vunpack.c.l.b16 %v2012
        %v2126 = vunpack.c.h.b16 %v2012
        %v2127 = vunpack.c.l.b16 %v2013
        %v2128 = vunpack.c.h.b16 %v2013
        %v2129 = vunpack.c.l.b16 %v2014
        %v2130 = vunpack.c.h.b16 %v2014
        %v2131 = vunpack.c.l.b16 %v2015
        %v2132 = vunpack.c.h.b16 %v2015
        %v2133 = vunpack.c.l.b16 %v2016
        %v2134 = vunpack.c.h.b16 %v2016
        %v2135 = vpack.c.b16 %v2075, %v2071
        %v2136 = vpack.c.b16 %v2076, %v2072
        %v2137 = vpack.c.b16 %v2077, %v2073
        %v2138 = vpack.c.b16 %v2078, %v2074
        %v2139 = vpack.c.b16 %v2083, %v2079
        %v2140 = vpack.c.b16 %v2084, %v2080
        %v2141 = vpack.c.b16 %v2085, %v2081
        %v2142 = vpack.c.b16 %v2086, %v2082
        %v2143 = vpack.c.b16 %v2091, %v2087
        %v2144 = vpack.c.b16 %v2092, %v2088
        %v2145 = vpack.c.b16 %v2093, %v2089
        %v2146 = vpack.c.b16 %v2094, %v2090
        %v2147 = vpack.c.b16 %v2099, %v2095
        %v2148 = vpack.c.b16 %v2100, %v2096
        %v2149 = vpack.c.b16 %v2101, %v2097
        %v2150 = vpack.c.b16 %v2102, %v2098
        %v2151 = vpack.c.b16 %v2107, %v2103
        %v2152 = vpack.c.b16 %v2108, %v2104
        %v2153 = vpack.c.b16 %v2109, %v2105
        %v2154 = vpack.c.b16 %v2110, %v2106
        %v2155 = vpack.c.b16 %v2115, %v2111
        %v2156 = vpack.c.b16 %v2116, %v2112
        %v2157 = vpack.c.b16 %v2117, %v2113
        %v2158 = vpack.c.b16 %v2118, %v2114
        %v2159 = vpack.c.b16 %v2123, %v2119
        %v2160 = vpack.c.b16 %v2124, %v2120
        %v2161 = vpack.c.b16 %v2125, %v2121
        %v2162 = vpack.c.b16 %v2126, %v2122
        %v2163 = vpack.c.b16 %v2131, %v2127
        %v2164 = vpack.c.b16 %v2132, %v2128
        %v2165 = vpack.c.b16 %v2133, %v2129
        %v2166 = vpack.c.b16 %v2134, %v2130
        %2199 = vmatprep.subr.bf16.mxu0 %v2136
        %2200 = vmatpush1.bf16.msra.mxu0 %v2135
        %2201 = vmatprep.subr.bf16.mxu0 %v2140
        %2202 = vmatpush1.bf16.msra.mxu0 %v2139
        %2203 = vmatprep.subr.bf16.mxu0 %v2144
        %2204 = vmatpush1.bf16.msra.mxu0 %v2143
        %2205 = vmatprep.subr.bf16.mxu0 %v2148
        %2206 = vmatpush1.bf16.msra.mxu0 %v2147
        %2207 = vmatprep.subr.bf16.mxu0 %v2152
        %2208 = vmatpush1.bf16.msra.mxu0 %v2151
        %2209 = vmatprep.subr.bf16.mxu0 %v2156
        %2210 = vmatpush1.bf16.msra.mxu0 %v2155
        %2211 = vmatprep.subr.bf16.mxu0 %v2160
        %2212 = vmatpush1.bf16.msra.mxu0 %v2159
        %2213 = vmatprep.subr.bf16.mxu0 %v2164
        %2214 = vmatpush1.bf16.msra.mxu0 %v2163
        %2215 = vmatprep.subr.bf16.mxu0 0
        %2216 = vmatpush1.bf16.msra.mxu0 0
        %2217 = vmatprep.subr.bf16.mxu0 0
        %2218 = vmatpush1.bf16.msra.mxu0 0
        %2219 = vmatprep.subr.bf16.mxu0 0
        %2220 = vmatpush1.bf16.msra.mxu0 0
        %2221 = vmatprep.subr.bf16.mxu0 0
        %2222 = vmatpush1.bf16.msra.mxu0 0
        %2223 = vmatprep.subr.bf16.mxu0 0
        %2224 = vmatpush1.bf16.msra.mxu0 0
        %2225 = vmatprep.subr.bf16.mxu0 0
        %2226 = vmatpush1.bf16.msra.mxu0 0
        %2227 = vmatprep.subr.bf16.mxu0 0
        %2228 = vmatpush1.bf16.msra.mxu0 0
        %2229 = vmatprep.subr.bf16.mxu0 0
        %2230 = vmatpush1.bf16.msra.mxu0 0
        %2231 = vmatprep.mubr.bf16.mxu0 0
        %2232 = vmatmul.mubr.bf16.gmra.mrb[0].mxu0 %v1977
        %v2233 = vpop.f32.mrb[0].mxu0
        %v2234 = vadd.f32 %v2022, %v2233
        %v2235 = vpop.f32.mrb[0].mxu0
        %v2236 = vadd.f32 %v2026, %v2235
        %v2237 = vpop.f32.mrb[0].mxu0
        %v2238 = vadd.f32 %v2022, %v2237
        %v2239 = vpop.f32.mrb[0].mxu0
        %v2240 = vadd.f32 %v2026, %v2239
        %2241 = vmatprep.mubr.bf16.mxu0 0
        %2242 = vmatmul.mubr.bf16.gmra.mrb[0].mxu0 %v1978
        %v2243 = vpop.f32.mrb[0].mxu0
        %v2244 = vadd.f32 %v2022, %v2243
        %v2245 = vpop.f32.mrb[0].mxu0
        %v2246 = vadd.f32 %v2026, %v2245
        %v2247 = vpop.f32.mrb[0].mxu0
        %v2248 = vadd.f32 %v2022, %v2247
        %v2249 = vpop.f32.mrb[0].mxu0
        %v2250 = vadd.f32 %v2026, %v2249
        %2251 = vmatprep.mubr.bf16.mxu0 0
        %2252 = vmatmul.mubr.bf16.gmra.mrb[0].mxu0 %v1979
        %v2253 = vpop.f32.mrb[0].mxu0
        %v2254 = vadd.f32 %v2022, %v2253
        %v2255 = vpop.f32.mrb[0].mxu0
        %v2256 = vadd.f32 %v2026, %v2255
        %v2257 = vpop.f32.mrb[0].mxu0
        %v2258 = vadd.f32 %v2022, %v2257
        %v2259 = vpop.f32.mrb[0].mxu0
        %v2260 = vadd.f32 %v2026, %v2259
        %2261 = vmatprep.mubr.bf16.mxu0 0
        %2262 = vmatmul.mubr.bf16.gmra.mrb[0].mxu0 %v1980
        %v2263 = vpop.f32.mrb[0].mxu0
        %v2264 = vadd.f32 %v2022, %v2263
        %v2265 = vpop.f32.mrb[0].mxu0
        %v2266 = vadd.f32 %v2026, %v2265
        %v2267 = vpop.f32.mrb[0].mxu0
        %v2268 = vadd.f32 %v2022, %v2267
        %v2269 = vpop.f32.mrb[0].mxu0
        %v2270 = vadd.f32 %v2026, %v2269
        %2271 = vmatprep.mubr.bf16.mxu0 0
        %2272 = vmatmul.mubr.bf16.gmra.mrb[0].mxu0 %v1981
        %v2273 = vpop.f32.mrb[0].mxu0
        %v2274 = vadd.f32 %v2022, %v2273
        %v2275 = vpop.f32.mrb[0].mxu0
        %v2276 = vadd.f32 %v2026, %v2275
        %v2277 = vpop.f32.mrb[0].mxu0
        %v2278 = vadd.f32 %v2022, %v2277
        %v2279 = vpop.f32.mrb[0].mxu0
        %v2280 = vadd.f32 %v2026, %v2279
        %2281 = vmatprep.mubr.bf16.mxu0 0
        %2282 = vmatmul.mubr.bf16.gmra.mrb[0].mxu0 %v1982
        %v2283 = vpop.f32.mrb[0].mxu0
        %v2284 = vadd.f32 %v2022, %v2283
        %v2285 = vpop.f32.mrb[0].mxu0
        %v2286 = vadd.f32 %v2026, %v2285
        %v2287 = vpop.f32.mrb[0].mxu0
        %v2288 = vadd.f32 %v2022, %v2287
        %v2289 = vpop.f32.mrb[0].mxu0
        %v2290 = vadd.f32 %v2026, %v2289
        %2291 = vmatprep.mubr.bf16.mxu0 0
        %2292 = vmatmul.mubr.bf16.gmra.mrb[0].mxu0 %v1983
        %v2293 = vpop.f32.mrb[0].mxu0
        %v2294 = vadd.f32 %v2022, %v2293
        %v2295 = vpop.f32.mrb[0].mxu0
        %v2296 = vadd.f32 %v2026, %v2295
        %v2297 = vpop.f32.mrb[0].mxu0
        %v2298 = vadd.f32 %v2022, %v2297
        %v2299 = vpop.f32.mrb[0].mxu0
        %v2300 = vadd.f32 %v2026, %v2299
        %2301 = vmatprep.mubr.bf16.mxu0 0
        %2302 = vmatmul.mubr.bf16.gmra.mrb[0].mxu0 %v1984
        %v2303 = vpop.f32.mrb[0].mxu0
        %v2304 = vadd.f32 %v2022, %v2303
        %v2305 = vpop.f32.mrb[0].mxu0
        %v2306 = vadd.f32 %v2026, %v2305
        %v2307 = vpop.f32.mrb[0].mxu0
        %v2308 = vadd.f32 %v2022, %v2307
        %v2309 = vpop.f32.mrb[0].mxu0
        %v2310 = vadd.f32 %v2026, %v2309
        %2311 = vdwg.mxu0
        %2312 = vmatprep.subr.bf16.mxu0 %v2138
        %2313 = vmatpush1.bf16.msra.mxu0 %v2137
        %2314 = vmatprep.subr.bf16.mxu0 %v2142
        %2315 = vmatpush1.bf16.msra.mxu0 %v2141
        %2316 = vmatprep.subr.bf16.mxu0 %v2146
        %2317 = vmatpush1.bf16.msra.mxu0 %v2145
        %2318 = vmatprep.subr.bf16.mxu0 %v2150
        %2319 = vmatpush1.bf16.msra.mxu0 %v2149
        %2320 = vmatprep.subr.bf16.mxu0 %v2154
        %2321 = vmatpush1.bf16.msra.mxu0 %v2153
        %2322 = vmatprep.subr.bf16.mxu0 %v2158
        %2323 = vmatpush1.bf16.msra.mxu0 %v2157
        %2324 = vmatprep.subr.bf16.mxu0 %v2162
        %2325 = vmatpush1.bf16.msra.mxu0 %v2161
        %2326 = vmatprep.subr.bf16.mxu0 %v2166
        %2327 = vmatpush1.bf16.msra.mxu0 %v2165
        %2328 = vmatprep.subr.bf16.mxu0 0
        %2329 = vmatpush1.bf16.msra.mxu0 0
        %2330 = vmatprep.subr.bf16.mxu0 0
        %2331 = vmatpush1.bf16.msra.mxu0 0
        %2332 = vmatprep.subr.bf16.mxu0 0
        %2333 = vmatpush1.bf16.msra.mxu0 0
        %2334 = vmatprep.subr.bf16.mxu0 0
        %2335 = vmatpush1.bf16.msra.mxu0 0
        %2336 = vmatprep.subr.bf16.mxu0 0
        %2337 = vmatpush1.bf16.msra.mxu0 0
        %2338 = vmatprep.subr.bf16.mxu0 0
        %2339 = vmatpush1.bf16.msra.mxu0 0
        %2340 = vmatprep.subr.bf16.mxu0 0
        %2341 = vmatpush1.bf16.msra.mxu0 0
        %2342 = vmatprep.subr.bf16.mxu0 0
        %2343 = vmatpush1.bf16.msra.mxu0 0
        %2344 = vmatprep.mubr.bf16.mxu0 0
        %2345 = vmatmul.mubr.bf16.gmra.mrb[0].mxu0 %v1977
        %v2346 = vpop.f32.mrb[0].mxu0
        %v2347 = vadd.f32 %v2030, %v2346
        %v2348 = vpop.f32.mrb[0].mxu0
        %v2349 = vadd.f32 %v2034, %v2348
        %v2350 = vpop.f32.mrb[0].mxu0
        %v2351 = vadd.f32 %v2030, %v2350
        %v2352 = vpop.f32.mrb[0].mxu0
        %v2353 = vadd.f32 %v2034, %v2352
        %2354 = vmatprep.mubr.bf16.mxu0 0
        %2355 = vmatmul.mubr.bf16.gmra.mrb[0].mxu0 %v1978
        %v2356 = vpop.f32.mrb[0].mxu0
        %v2357 = vadd.f32 %v2030, %v2356
        %v2358 = vpop.f32.mrb[0].mxu0
        %v2359 = vadd.f32 %v2034, %v2358
        %v2360 = vpop.f32.mrb[0].mxu0
        %v2361 = vadd.f32 %v2030, %v2360
        %v2362 = vpop.f32.mrb[0].mxu0
        %v2363 = vadd.f32 %v2034, %v2362
        %2364 = vmatprep.mubr.bf16.mxu0 0
        %2365 = vmatmul.mubr.bf16.gmra.mrb[0].mxu0 %v1979
        %v2366 = vpop.f32.mrb[0].mxu0
        %v2367 = vadd.f32 %v2030, %v2366
        %v2368 = vpop.f32.mrb[0].mxu0
        %v2369 = vadd.f32 %v2034, %v2368
        %v2370 = vpop.f32.mrb[0].mxu0
        %v2371 = vadd.f32 %v2030, %v2370
        %v2372 = vpop.f32.mrb[0].mxu0
        %v2373 = vadd.f32 %v2034, %v2372
        %2374 = vmatprep.mubr.bf16.mxu0 0
        %2375 = vmatmul.mubr.bf16.gmra.mrb[0].mxu0 %v1980
        %v2376 = vpop.f32.mrb[0].mxu0
        %v2377 = vadd.f32 %v2030, %v2376
        %v2378 = vpop.f32.mrb[0].mxu0
        %v2379 = vadd.f32 %v2034, %v2378
        %v2380 = vpop.f32.mrb[0].mxu0
        %v2381 = vadd.f32 %v2030, %v2380
        %v2382 = vpop.f32.mrb[0].mxu0
        %v2383 = vadd.f32 %v2034, %v2382
        %2384 = vmatprep.mubr.bf16.mxu0 0
        %2385 = vmatmul.mubr.bf16.gmra.mrb[0].mxu0 %v1981
        %v2386 = vpop.f32.mrb[0].mxu0
        %v2387 = vadd.f32 %v2030, %v2386
        %v2388 = vpop.f32.mrb[0].mxu0
        %v2389 = vadd.f32 %v2034, %v2388
        %v2390 = vpop.f32.mrb[0].mxu0
        %v2391 = vadd.f32 %v2030, %v2390
        %v2392 = vpop.f32.mrb[0].mxu0
        %v2393 = vadd.f32 %v2034, %v2392
        %2394 = vmatprep.mubr.bf16.mxu0 0
        %2395 = vmatmul.mubr.bf16.gmra.mrb[0].mxu0 %v1982
        %v2396 = vpop.f32.mrb[0].mxu0
        %v2397 = vadd.f32 %v2030, %v2396
        %v2398 = vpop.f32.mrb[0].mxu0
        %v2399 = vadd.f32 %v2034, %v2398
        %v2400 = vpop.f32.mrb[0].mxu0
        %v2401 = vadd.f32 %v2030, %v2400
        %v2402 = vpop.f32.mrb[0].mxu0
        %v2403 = vadd.f32 %v2034, %v2402
        %2404 = vmatprep.mubr.bf16.mxu0 0
        %2405 = vmatmul.mubr.bf16.gmra.mrb[0].mxu0 %v1983
        %v2406 = vpop.f32.mrb[0].mxu0
        %v2407 = vadd.f32 %v2030, %v2406
        %v2408 = vpop.f32.mrb[0].mxu0
        %v2409 = vadd.f32 %v2034, %v2408
        %v2410 = vpop.f32.mrb[0].mxu0
        %v2411 = vadd.f32 %v2030, %v2410
        %v2412 = vpop.f32.mrb[0].mxu0
        %v2413 = vadd.f32 %v2034, %v2412
        %2414 = vmatprep.mubr.bf16.mxu0 0
        %2415 = vmatmul.mubr.bf16.gmra.mrb[0].mxu0 %v1984
        %v2416 = vpop.f32.mrb[0].mxu0
        %v2417 = vadd.f32 %v2030, %v2416
        %v2418 = vpop.f32.mrb[0].mxu0
        %v2419 = vadd.f32 %v2034, %v2418
        %v2420 = vpop.f32.mrb[0].mxu0
        %v2421 = vadd.f32 %v2030, %v2420
        %v2422 = vpop.f32.mrb[0].mxu0
        %v2423 = vadd.f32 %v2034, %v2422
        %2424 = vdwg.mxu0
        %2425 = vst [vmem:[%s726] sm:$0xff] %v2234
        %2426 = vst [vmem:[%s726 + $0x8] sm:$0xff] %v2236
        %2427 = vst [vmem:[%s726 + $0x10] sm:$0xff] %v2347
        %2428 = vst [vmem:[%s726 + $0x18] sm:$0xff] %v2349
        %2429 = vst [vmem:[%s726 + $0x20] sm:$0xff] %v2238
        %2430 = vst [vmem:[%s726 + $0x28] sm:$0xff] %v2240
        %2431 = vst [vmem:[%s726 + $0x30] sm:$0xff] %v2351
        %2432 = vst [vmem:[%s726 + $0x38] sm:$0xff] %v2353
        %2433 = vst [vmem:[%s726 + $0x40] sm:$0xff] %v2244
        %2434 = vst [vmem:[%s726 + $0x48] sm:$0xff] %v2246
        %2435 = vst [vmem:[%s726 + $0x50] sm:$0xff] %v2357
        %2436 = vst [vmem:[%s726 + $0x58] sm:$0xff] %v2359
        %2437 = vst [vmem:[%s726 + $0x60] sm:$0xff] %v2248
        %2438 = vst [vmem:[%s726 + $0x68] sm:$0xff] %v2250
        %2439 = vst [vmem:[%s726 + $0x70] sm:$0xff] %v2361
        %2440 = vst [vmem:[%s726 + $0x78] sm:$0xff] %v2363
        %2441 = vst [vmem:[%s726 + $0x80] sm:$0xff] %v2254
        %2442 = vst [vmem:[%s726 + $0x88] sm:$0xff] %v2256
        %2443 = vst [vmem:[%s726 + $0x90] sm:$0xff] %v2367
        %2444 = vst [vmem:[%s726 + $0x98] sm:$0xff] %v2369
        %2445 = vst [vmem:[%s726 + $0xa0] sm:$0xff] %v2258
        %2446 = vst [vmem:[%s726 + $0xa8] sm:$0xff] %v2260
        %2447 = vst [vmem:[%s726 + $0xb0] sm:$0xff] %v2371
        %2448 = vst [vmem:[%s726 + $0xb8] sm:$0xff] %v2373
        %2449 = vst [vmem:[%s726 + $0xc0] sm:$0xff] %v2264
        %2450 = vst [vmem:[%s726 + $0xc8] sm:$0xff] %v2266
        %2451 = vst [vmem:[%s726 + $0xd0] sm:$0xff] %v2377
        %2452 = vst [vmem:[%s726 + $0xd8] sm:$0xff] %v2379
        %2453 = vst [vmem:[%s726 + $0xe0] sm:$0xff] %v2268
        %2454 = vst [vmem:[%s726 + $0xe8] sm:$0xff] %v2270
        %2455 = vst [vmem:[%s726 + $0xf0] sm:$0xff] %v2381
        %2456 = vst [vmem:[%s726 + $0xf8] sm:$0xff] %v2383
        %2457 = vst [vmem:[%s726 + $0x100] sm:$0xff] %v2274
        %2458 = vst [vmem:[%s726 + $0x108] sm:$0xff] %v2276
        %2459 = vst [vmem:[%s726 + $0x110] sm:$0xff] %v2387
        %2460 = vst [vmem:[%s726 + $0x118] sm:$0xff] %v2389
        %2461 = vst [vmem:[%s726 + $0x120] sm:$0xff] %v2278
        %2462 = vst [vmem:[%s726 + $0x128] sm:$0xff] %v2280
        %2463 = vst [vmem:[%s726 + $0x130] sm:$0xff] %v2391
        %2464 = vst [vmem:[%s726 + $0x138] sm:$0xff] %v2393
        %2465 = vst [vmem:[%s726 + $0x140] sm:$0xff] %v2284
        %2466 = vst [vmem:[%s726 + $0x148] sm:$0xff] %v2286
        %2467 = vst [vmem:[%s726 + $0x150] sm:$0xff] %v2397
        %2468 = vst [vmem:[%s726 + $0x158] sm:$0xff] %v2399
        %2469 = vst [vmem:[%s726 + $0x160] sm:$0xff] %v2288
        %2470 = vst [vmem:[%s726 + $0x168] sm:$0xff] %v2290
        %2471 = vst [vmem:[%s726 + $0x170] sm:$0xff] %v2401
        %2472 = vst [vmem:[%s726 + $0x178] sm:$0xff] %v2403
        %2473 = vst [vmem:[%s726 + $0x180] sm:$0xff] %v2294
        %2474 = vst [vmem:[%s726 + $0x188] sm:$0xff] %v2296
        %2475 = vst [vmem:[%s726 + $0x190] sm:$0xff] %v2407
        %2476 = vst [vmem:[%s726 + $0x198] sm:$0xff] %v2409
        %2477 = vst [vmem:[%s726 + $0x1a0] sm:$0xff] %v2298
        %2478 = vst [vmem:[%s726 + $0x1a8] sm:$0xff] %v2300
        %2479 = vst [vmem:[%s726 + $0x1b0] sm:$0xff] %v2411
        %2480 = vst [vmem:[%s726 + $0x1b8] sm:$0xff] %v2413
        %2481 = vst [vmem:[%s726 + $0x1c0] sm:$0xff] %v2304
        %2482 = vst [vmem:[%s726 + $0x1c8] sm:$0xff] %v2306
        %2483 = vst [vmem:[%s726 + $0x1d0] sm:$0xff] %v2417
        %2484 = vst [vmem:[%s726 + $0x1d8] sm:$0xff] %v2419
        %2485 = vst [vmem:[%s726 + $0x1e0] sm:$0xff] %v2308
        %2486 = vst [vmem:[%s726 + $0x1e8] sm:$0xff] %v2310
        %2487 = vst [vmem:[%s726 + $0x1f0] sm:$0xff] %v2421
        %2488 = vst [vmem:[%s726 + $0x1f8] sm:$0xff] %v2423
        %s2489 = sand.u32 %s357, 1
        %s2490 = scalar_lea.sflag [#allocation4], %s2489
        %s2491 = sand.u32 %s357, 1
        %s2492 = smul.addr %s2491, 384
        %s2493 = scalar_lea.vmem [#allocation25], %s2492
        %s2494 = sand.u32 %s383, 1
        %s2495 = scalar_lea.sflag [#allocation27], %s2494
        %s2496 = sand.u32 %s383, 1
        %s2497 = smul.addr %s2496, 512
        %s2498 = scalar_lea.vmem [#allocation26], %s2497
        // Predicated region
        $region133: #{vae_forward.1} parent=75 // pred_check
          %p2499 = pneg %p367
        $region134: #{vae_forward.1} parent=75 // pred_check_branch
          %2501 = sbr.rel (%p2499) target = $region136
        $region135: #{vae_forward.1} parent=75 // pred_region
          %s2502 = smul.u32 16, %s45
          %s2504 = ssub.s32 6144, 6144
          %2505 = vsyncadd %s2490, %s2504
          %s2506 = smul.addr %s2502, 3
          %s2507 = smul.addr %s2506, 128
          %s2508 = scalar_lea.hbm %s14, %s2507
          %s2509 = sshll.u32 %s2493, 4
          %s2510 = int_to_ptr.vmem [resolvable:$true] %s2509
          %2515 = dma.vmem_to_hbm [thread:$0]  %s2510, 6144, %s2508, %s2490, 384, 384, 24
        $region136: #{vae_forward.1} parent=75 // pred_fallthru
          _
        // Predicated region
        $region137: #{vae_forward.1} parent=75 // pred_check
          %p2516 = pneg %p393
        $region138: #{vae_forward.1} parent=75 // pred_check_branch
          %2518 = sbr.rel (%p2516) target = $region140
        $region139: #{vae_forward.1} parent=75 // pred_region
          %s2519 = smul.u32 16, %s45
          %s2521 = ssub.s32 8192, 8192
          %2522 = vsyncadd %s2495, %s2521
          %s2523 = smul.addr %s2519, 4
          %s2524 = smul.addr %s2523, 128
          %s2525 = scalar_lea.hbm %s15, %s2524
          %s2526 = sshll.u32 %s2498, 4
          %s2527 = int_to_ptr.vmem [resolvable:$true] %s2526
          %2532 = dma.vmem_to_hbm [thread:$0]  %s2527, 8192, %s2525, %s2495, 512, 512, 32
        $region140: #{vae_forward.1} parent=75 // pred_fallthru
          _
      $region76: #{vae_forward.1} parent=5 // pred_fallthru
        _
      %p2533 = scmp.le.s32.totalorder 2, %s40
      // Predicated region
      $region141: #{vae_forward.1} parent=5 // pred_check
        %p2534 = pneg %p2533
      $region142: #{vae_forward.1} parent=5 // pred_check_branch
        %2536 = sbr.rel (%p2534) target = $region144
      $region143: #{vae_forward.1} parent=5 // pred_region
        %s2537 = ssub.s32 %s40, 2
        // Predicated region
        $region145: #{vae_forward.1} parent=143 // pred_check
          %p2538 = pneg %p373
        $region146: #{vae_forward.1} parent=143 // pred_check_branch
          %2540 = sbr.rel (%p2538) target = $region148
        $region147: #{vae_forward.1} parent=143 // pred_region
          %s2541 = sand.u32 %s358, 1
          %s2542 = scalar_lea.sflag [#allocation4], %s2541
          %s2543 = sand.u32 %s358, 1
          %s2544 = smul.addr %s2543, 384
          %s2545 = scalar_lea.vmem [#allocation25], %s2544
          %2546 = dma.done %s2542, 6144
        $region148: #{vae_forward.1} parent=143 // pred_fallthru
          _
        // Predicated region
        $region149: #{vae_forward.1} parent=143 // pred_check
          %p2547 = pneg %p399
        $region150: #{vae_forward.1} parent=143 // pred_check_branch
          %2549 = sbr.rel (%p2547) target = $region152
        $region151: #{vae_forward.1} parent=143 // pred_region
          %s2550 = sand.u32 %s384, 1
          %s2551 = scalar_lea.sflag [#allocation27], %s2550
          %s2552 = sand.u32 %s384, 1
          %s2553 = smul.addr %s2552, 512
          %s2554 = scalar_lea.vmem [#allocation26], %s2553
          %2555 = dma.done %s2551, 8192
        $region152: #{vae_forward.1} parent=143 // pred_fallthru
          _
      $region144: #{vae_forward.1} parent=5 // pred_fallthru
        _
    $region6: #{vae_forward.1} parent=1 // loop_footer
      %s44 = sadd.s32 1, %s40
    $region7: #{vae_forward.1} parent=1 // loop_footer_branch
      %39 = sbr.rel target = $region3
    $region8: #{vae_forward.1} parent=1 // loop_exit
      _
    %2556 = vsyncpa [#allocation3], 1
    %s2557 = scalar_lea.sflag [#allocation3], 1
    %2558 = vsyncpa %s2557, 1
    %2559 = vsyncpa [#allocation6], 1
    %s2560 = scalar_lea.sflag [#allocation6], 1
    %2561 = vsyncpa %s2560, 1
    %2562 = vsyncpa [#allocation9], 1
    %2563 = vsyncpa [#allocation12], 1
    %2564 = vsyncpa [#allocation15], 1
    %2565 = vsyncpa [#allocation18], 1
    %2566 = vsyncpa [#allocation21], 1
    %2567 = vsyncpa [#allocation24], 1
    %2568 = vsyncpa [#allocation4], 1
    %s2569 = scalar_lea.sflag [#allocation4], 1
    %2570 = vsyncpa %s2569, 1
    %2571 = vsyncpa [#allocation27], 1
    %s2572 = scalar_lea.sflag [#allocation27], 1
    %2573 = vsyncpa %s2572, 1

</llo_original>
